<compile_context>
chip_gen: v6e
topology: v6e:2x2x1
jax: 0.10.0
libtpu: 0.0.40
codegen_flags: <defaults>
</compile_context>

<pallas_src>
import numpy as np
import jax
import jax.numpy as jnp
from jax.experimental import pallas as pl
from jax.experimental.pallas import tpu as pltpu


# ------------------------------ Pallas kernel ------------------------------ #

def _make_csp_kernel(n_bottlenecks, H, W):
    """Returns a kernel computing the full CSPLayer on one (C, tm) tile.

    Ref order:
      x, tap_masks, w1t, b1, w2t, b2,
      [bw1t, bb1, bw2t, bb2] * n_bottlenecks,
      w3a, w3b, b3, out
    Shapes (tm = lane tile of the flattened N*H*W axis, Ch = hidden channels):
      x:      (Cin, tm)   bf16
      masks:  (9, 1, tm)  f32   3x3 tap validity masks (image boundaries)
      w*t:    (Co, Ci)    bf16  BN-scale-folded, transposed weights
      bw2t:   (9, Ch, Ch) bf16  per-tap 3x3 weights
      b*:     (Co, 1)     f32
      out:    (Cout, tm)  f32
    """

    def conv1x1_silu(w_ref, b_ref, act_bf16):
        y = jnp.dot(w_ref[...], act_bf16,
                    preferred_element_type=jnp.float32) + b_ref[...]
        return y * jax.nn.sigmoid(y)                      # f32 epilogue

    def kernel(*refs):
        x_ref, m_ref, w1_ref, b1_ref, w2_ref, b2_ref = refs[:6]
        rest = refs[6:]
        blks = [rest[4 * i: 4 * i + 4] for i in range(n_bottlenecks)]
        w3a_ref, w3b_ref, b3_ref, o_ref = rest[4 * n_bottlenecks:]

        xb = x_ref[...]                                   # (Cin, tm) bf16
        tm = xb.shape[1]

        # conv1 / conv2 share the same input tile -> one kernel, one x read.
        x1 = conv1x1_silu(w1_ref, b1_ref, xb)             # (Ch, tm) f32
        x2 = conv1x1_silu(w2_ref, b2_ref, xb)             # (Ch, tm) f32

        # Bottleneck chain: 1x1 -> 3x3 -> (+ residual, added post-SiLU).
        for bw1_ref, bb1_ref, bw2_ref, bb2_ref in blks:
            t = conv1x1_silu(bw1_ref, bb1_ref, x1.astype(jnp.bfloat16))
            acc = jnp.zeros_like(t)                       # (Ch, tm) f32
            for tap in range(9):
                dy, dx = tap // 3 - 1, tap % 3 - 1
                if dy == 0 and dx == 0:
                    shifted = t
                else:
                    s = dy * W + dx                       # flattened shift
                    # shifted[m] = t[m + s]; wrapped / out-of-image lanes are
                    # zeroed by the precomputed tap mask (XLU roll is ~free).
                    shifted = pltpu.roll(t, (-s) % tm, 1) * m_ref[tap]
                acc = acc + jnp.dot(bw2_ref[tap],
                                    shifted.astype(jnp.bfloat16),
                                    preferred_element_type=jnp.float32)
            y = acc + bb2_ref[...]
            x1 = y * jax.nn.sigmoid(y) + x1               # residual post-SiLU

        # conv3 on concat([x1, x2], channel)  ==  W3a @ x1 + W3b @ x2.
        y3 = (jnp.dot(w3a_ref[...], x1.astype(jnp.bfloat16),
                      preferred_element_type=jnp.float32) +
              jnp.dot(w3b_ref[...], x2.astype(jnp.bfloat16),
                      preferred_element_type=jnp.float32) +
              b3_ref[...])
        o_ref[...] = (y3 * jax.nn.sigmoid(y3)).astype(o_ref.dtype)

    return kernel


# ------------------------------- host helpers ------------------------------ #

def _pick_tile_m(M, HW, max_tile=2048):
    """Largest image-aligned lane tile of the flattened N*H*W axis that is a
    multiple of 128 and gives >= 2 grid steps (TensorCore sharding on v7x);
    falls back to the full axis if no such tile exists."""
    n_imgs = M // HW
    valid = [k * HW for k in range(1, n_imgs + 1)
             if n_imgs % k == 0 and ((k * HW) % 128 == 0 or k * HW == M)]
    multi = [t for t in valid if M // t >= 2 and t <= max_tile]
    return max(multi) if multi else M


def _tap_masks(tm, H, W):
    """(9, 1, tm) float masks: 1 where the 3x3 tap stays inside the image."""
    ids = np.arange(tm)
    wq = ids % W
    hq = (ids // W) % H
    masks = np.zeros((9, 1, tm), np.float32)
    for tap in range(9):
        dy, dx = tap // 3 - 1, tap % 3 - 1
        ok = (hq + dy >= 0) & (hq + dy < H) & (wq + dx >= 0) & (wq + dx < W)
        masks[tap, 0, :] = ok.astype(np.float32)
    return jnp.asarray(masks)


def _full_spec(arr):
    nd = arr.ndim
    return pl.BlockSpec(arr.shape, lambda i: (0,) * nd)


def csp_layer(x_nhwc, p):
    """CSPLayer.forward (shortcut=True, depthwise=False), NHWC in/out."""
    N, H, W, Cin = x_nhwc.shape
    M = N * H * W
    hidden = p["hidden"]
    cout = p["conv3"]["bias"].shape[0]
    n = len(p["m"])

    tm = _pick_tile_m(M, H * W)
    grid = (M // tm,)

    # Channel-major activations: (C, N*H*W), flattened spatial axis on lanes.
    x_cm = jnp.transpose(x_nhwc, (3, 0, 1, 2)).reshape(Cin, M).astype(jnp.bfloat16)
    masks = _tap_masks(tm, H, W)
    w3 = p["conv3"]["wt"]
    w3a, w3b = w3[:, :hidden], w3[:, hidden:]

    args = [x_cm, masks,
            p["conv1"]["wt"], p["conv1"]["bias"],
            p["conv2"]["wt"], p["conv2"]["bias"]]
    for blk in p["m"]:
        args += [blk["c1"]["wt"], blk["c1"]["bias"],
                 blk["c2"]["wt"], blk["c2"]["bias"]]
    args += [w3a, w3b, p["conv3"]["bias"]]

    in_specs = [pl.BlockSpec((Cin, tm), lambda i: (0, i))]
    in_specs += [_full_spec(a) for a in args[1:]]

    out_cm = pl.pallas_call(
        _make_csp_kernel(n, H, W),
        out_shape=jax.ShapeDtypeStruct((cout, M), jnp.float32),
        grid_spec=pltpu.PrefetchScalarGridSpec(
            num_scalar_prefetch=0,
            grid=grid,
            in_specs=in_specs,
            out_specs=pl.BlockSpec((cout, tm), lambda i: (0, i)),
        ),
        compiler_params=pltpu.CompilerParams(
            dimension_semantics=("parallel",)),
    )(*args)

    return jnp.transpose(out_cm.reshape(cout, N, H, W), (1, 2, 3, 0))


# --------------------------------- params ---------------------------------- #

def make_baseconv_params(key, cin, cout, ksize):
    """Conv2d(ksize, bias=False) + BatchNorm2d (inference) folded for the kernel."""
    kw, kg, kb, km, kv = jax.random.split(key, 5)
    fan_in = cin * ksize * ksize
    w = jax.random.normal(kw, (ksize, ksize, cin, cout), jnp.float32) / jnp.sqrt(fan_in)
    gamma = jax.random.uniform(kg, (cout,), jnp.float32, 0.5, 1.5)
    beta = jax.random.normal(kb, (cout,), jnp.float32) * 0.1
    running_mean = jax.random.normal(km, (cout,), jnp.float32) * 0.1
    running_var = jax.random.uniform(kv, (cout,), jnp.float32, 0.5, 1.5)
    eps = 1e-5
    scale = gamma / jnp.sqrt(running_var + eps)
    bias = beta - running_mean * scale
    # Fold the BN scale into the conv weight; quantize to bf16 (MXU operand).
    wf = (w * scale[None, None, None, :]).astype(jnp.bfloat16)
    # Transposed per-tap weights for the channel-major GEMM: (k*k, cout, cin).
    wt = jnp.transpose(wf, (0, 1, 3, 2)).reshape(ksize * ksize, cout, cin)
    if ksize == 1:
        wt = wt[0]                                        # (cout, cin)
    return dict(
        wt=wt,                                            # bf16 kernel operand
        bias=bias.reshape(cout, 1),                       # f32 folded BN bias
        w_ref=wf.astype(jnp.float32),                     # HWIO weight for XLA ref
    )


def make_csp_params(key, cin, cout, n=1, expansion=0.5):
    hidden = int(cout * expansion)
    keys = jax.random.split(key, 3 + 2 * n)
    return dict(
        hidden=hidden,
        conv1=make_baseconv_params(keys[0], cin, hidden, 1),
        conv2=make_baseconv_params(keys[1], cin, hidden, 1),
        conv3=make_baseconv_params(keys[2], 2 * hidden, cout, 1),
        m=[dict(c1=make_baseconv_params(keys[3 + 2 * i], hidden, hidden, 1),
                c2=make_baseconv_params(keys[4 + 2 * i], hidden, hidden, 3))
           for i in range(n)],
    )


# ---------------------------- pure-JAX reference ---------------------------- #

def _base_conv_ref(x, p):
    y = jax.lax.conv_general_dilated(
        x, p["w_ref"], window_strides=(1, 1), padding="SAME",
        dimension_numbers=("NHWC", "HWIO", "NHWC"))
    y = y + p["bias"].reshape(1, 1, 1, -1)
    return y * jax.nn.sigmoid(y)


def _csp_ref(x, p):
    x1 = _base_conv_ref(x, p["conv1"])
    for blk in p["m"]:
        x1 = _base_conv_ref(_base_conv_ref(x1, blk["c1"]), blk["c2"]) + x1
    x2 = _base_conv_ref(x, p["conv2"])
    return _base_conv_ref(jnp.concatenate([x1, x2], axis=-1), p["conv3"])


# ------------------------------------ main ---------------------------------- #

if __name__ == "__main__":
    key = jax.random.PRNGKey(0)
    kx, kp = jax.random.split(key)

    N, H, W = 2, 16, 16
    in_channels, out_channels, n_bottlenecks = 16, 16, 2

    x = jax.random.normal(kx, (N, H, W, in_channels), jnp.float32)
    params = make_csp_params(kp, in_channels, out_channels, n=n_bottlenecks)

    out = jax.jit(lambda xx: csp_layer(xx, params))(x)
    out = jax.block_until_ready(out)

    ref = _csp_ref(x, params)
    assert out.shape == (N, H, W, out_channels)
    err = float(jnp.max(jnp.abs(out - ref)))
    assert jnp.allclose(out, ref, rtol=5e-2, atol=5e-2), \
        f"mismatch vs reference (max abs err {err:.4f})"

    print("KERNEL_OK")
</pallas_src>

<mosaic_0001>
module attributes {stable_mosaic.version = 11 : i64} {
  func.func @kernel(%arg0: i32, %arg1: memref<16x256xbf16, #tpu.memory_space<vmem>>, %arg2: memref<9x1x256xf32, #tpu.memory_space<vmem>>, %arg3: memref<8x16xbf16, #tpu.memory_space<vmem>>, %arg4: memref<8x1xf32, #tpu.memory_space<vmem>>, %arg5: memref<8x16xbf16, #tpu.memory_space<vmem>>, %arg6: memref<8x1xf32, #tpu.memory_space<vmem>>, %arg7: memref<8x8xbf16, #tpu.memory_space<vmem>>, %arg8: memref<8x1xf32, #tpu.memory_space<vmem>>, %arg9: memref<9x8x8xbf16, #tpu.memory_space<vmem>>, %arg10: memref<8x1xf32, #tpu.memory_space<vmem>>, %arg11: memref<8x8xbf16, #tpu.memory_space<vmem>>, %arg12: memref<8x1xf32, #tpu.memory_space<vmem>>, %arg13: memref<9x8x8xbf16, #tpu.memory_space<vmem>>, %arg14: memref<8x1xf32, #tpu.memory_space<vmem>>, %arg15: memref<16x8xbf16, #tpu.memory_space<vmem>>, %arg16: memref<16x8xbf16, #tpu.memory_space<vmem>>, %arg17: memref<16x1xf32, #tpu.memory_space<vmem>>, %arg18: memref<16x256xf32, #tpu.memory_space<vmem>>) attributes {dimension_semantics = [#tpu.dimension_semantics<parallel>], iteration_bounds = array<i64: 2>, scalar_prefetch = 0 : i64, scratch_operands = 0 : i64, tpu.core_type = #tpu.core_type<tc>, window_params = [{transform_indices = @transform_0, window_bounds = array<i64: 16, 256>}, {pipeline_mode = #tpu.pipeline_mode<synchronous>, transform_indices = @transform_1, window_bounds = array<i64: 9, 1, 256>}, {pipeline_mode = #tpu.pipeline_mode<synchronous>, transform_indices = @transform_2, window_bounds = array<i64: 8, 16>}, {pipeline_mode = #tpu.pipeline_mode<synchronous>, transform_indices = @transform_3, window_bounds = array<i64: 8, 1>}, {pipeline_mode = #tpu.pipeline_mode<synchronous>, transform_indices = @transform_4, window_bounds = array<i64: 8, 16>}, {pipeline_mode = #tpu.pipeline_mode<synchronous>, transform_indices = @transform_5, window_bounds = array<i64: 8, 1>}, {pipeline_mode = #tpu.pipeline_mode<synchronous>, transform_indices = @transform_6, window_bounds = array<i64: 8, 8>}, {pipeline_mode = #tpu.pipeline_mode<synchronous>, transform_indices = @transform_7, window_bounds = array<i64: 8, 1>}, {pipeline_mode = #tpu.pipeline_mode<synchronous>, transform_indices = @transform_8, window_bounds = array<i64: 9, 8, 8>}, {pipeline_mode = #tpu.pipeline_mode<synchronous>, transform_indices = @transform_9, window_bounds = array<i64: 8, 1>}, {pipeline_mode = #tpu.pipeline_mode<synchronous>, transform_indices = @transform_10, window_bounds = array<i64: 8, 8>}, {pipeline_mode = #tpu.pipeline_mode<synchronous>, transform_indices = @transform_11, window_bounds = array<i64: 8, 1>}, {pipeline_mode = #tpu.pipeline_mode<synchronous>, transform_indices = @transform_12, window_bounds = array<i64: 9, 8, 8>}, {pipeline_mode = #tpu.pipeline_mode<synchronous>, transform_indices = @transform_13, window_bounds = array<i64: 8, 1>}, {pipeline_mode = #tpu.pipeline_mode<synchronous>, transform_indices = @transform_14, window_bounds = array<i64: 16, 8>}, {pipeline_mode = #tpu.pipeline_mode<synchronous>, transform_indices = @transform_15, window_bounds = array<i64: 16, 8>}, {pipeline_mode = #tpu.pipeline_mode<synchronous>, transform_indices = @transform_16, window_bounds = array<i64: 16, 1>}, {transform_indices = @transform_17, window_bounds = array<i64: 16, 256>}]} {
    %c0 = arith.constant 0 : index
    %c0_0 = arith.constant 0 : index
    %0 = vector.load %arg1[%c0, %c0_0] : memref<16x256xbf16, #tpu.memory_space<vmem>>, vector<16x256xbf16>
    %c0_1 = arith.constant 0 : index
    %c0_2 = arith.constant 0 : index
    %1 = vector.load %arg3[%c0_1, %c0_2] : memref<8x16xbf16, #tpu.memory_space<vmem>>, vector<8x16xbf16>
    %cst = arith.constant dense<0.000000e+00> : vector<8x256xf32>
    %2 = tpu.matmul %1, %0, %cst {dimension_numbers = #tpu.dot_dimension_numbers<[1], [0], [0], [1], [0, 0, 1, 1], [], []>} : vector<8x16xbf16>, vector<16x256xbf16>, vector<8x256xf32> -> vector<8x256xf32>
    %c0_3 = arith.constant 0 : index
    %c0_4 = arith.constant 0 : index
    %3 = vector.load %arg4[%c0_3, %c0_4] : memref<8x1xf32, #tpu.memory_space<vmem>>, vector<8x1xf32>
    %4 = vector.broadcast %3 : vector<8x1xf32> to vector<8x256xf32>
    %5 = arith.addf %2, %4 : vector<8x256xf32>
    %6 = arith.negf %5 : vector<8x256xf32>
    %7 = math.exp %6 : vector<8x256xf32>
    %cst_5 = arith.constant 1.000000e+00 : f32
    %8 = vector.broadcast %cst_5 : f32 to vector<8x256xf32>
    %9 = arith.addf %8, %7 : vector<8x256xf32>
    %10 = arith.divf %8, %9 : vector<8x256xf32>
    %11 = arith.mulf %5, %10 : vector<8x256xf32>
    %c0_6 = arith.constant 0 : index
    %c0_7 = arith.constant 0 : index
    %12 = vector.load %arg5[%c0_6, %c0_7] : memref<8x16xbf16, #tpu.memory_space<vmem>>, vector<8x16xbf16>
    %cst_8 = arith.constant dense<0.000000e+00> : vector<8x256xf32>
    %13 = tpu.matmul %12, %0, %cst_8 {dimension_numbers = #tpu.dot_dimension_numbers<[1], [0], [0], [1], [0, 0, 1, 1], [], []>} : vector<8x16xbf16>, vector<16x256xbf16>, vector<8x256xf32> -> vector<8x256xf32>
    %c0_9 = arith.constant 0 : index
    %c0_10 = arith.constant 0 : index
    %14 = vector.load %arg6[%c0_9, %c0_10] : memref<8x1xf32, #tpu.memory_space<vmem>>, vector<8x1xf32>
    %15 = vector.broadcast %14 : vector<8x1xf32> to vector<8x256xf32>
    %16 = arith.addf %13, %15 : vector<8x256xf32>
    %17 = arith.negf %16 : vector<8x256xf32>
    %18 = math.exp %17 : vector<8x256xf32>
    %cst_11 = arith.constant 1.000000e+00 : f32
    %19 = vector.broadcast %cst_11 : f32 to vector<8x256xf32>
    %20 = arith.addf %19, %18 : vector<8x256xf32>
    %21 = arith.divf %19, %20 : vector<8x256xf32>
    %22 = arith.mulf %16, %21 : vector<8x256xf32>
    %23 = arith.truncf %11 : vector<8x256xf32> to vector<8x256xbf16>
    %c0_12 = arith.constant 0 : index
    %c0_13 = arith.constant 0 : index
    %24 = vector.load %arg7[%c0_12, %c0_13] : memref<8x8xbf16, #tpu.memory_space<vmem>>, vector<8x8xbf16>
    %cst_14 = arith.constant dense<0.000000e+00> : vector<8x256xf32>
    %25 = tpu.matmul %24, %23, %cst_14 {dimension_numbers = #tpu.dot_dimension_numbers<[1], [0], [0], [1], [0, 0, 1, 1], [], []>} : vector<8x8xbf16>, vector<8x256xbf16>, vector<8x256xf32> -> vector<8x256xf32>
    %c0_15 = arith.constant 0 : index
    %c0_16 = arith.constant 0 : index
    %26 = vector.load %arg8[%c0_15, %c0_16] : memref<8x1xf32, #tpu.memory_space<vmem>>, vector<8x1xf32>
    %27 = vector.broadcast %26 : vector<8x1xf32> to vector<8x256xf32>
    %28 = arith.addf %25, %27 : vector<8x256xf32>
    %29 = arith.negf %28 : vector<8x256xf32>
    %30 = math.exp %29 : vector<8x256xf32>
    %cst_17 = arith.constant 1.000000e+00 : f32
    %31 = vector.broadcast %cst_17 : f32 to vector<8x256xf32>
    %32 = arith.addf %31, %30 : vector<8x256xf32>
    %33 = arith.divf %31, %32 : vector<8x256xf32>
    %34 = arith.mulf %28, %33 : vector<8x256xf32>
    %cst_18 = arith.constant 0.000000e+00 : f32
    %35 = vector.broadcast %cst_18 : f32 to vector<8x256xf32>
    %c17_i32 = arith.constant 17 : i32
    %36 = tpu.dynamic_rotate %34 by %c17_i32 dim 1 : vector<8x256xf32>, i32 -> vector<8x256xf32>
    %c0_19 = arith.constant 0 : index
    %c0_20 = arith.constant 0 : index
    %c0_21 = arith.constant 0 : index
    %37 = vector.load %arg2[%c0_19, %c0_20, %c0_21] : memref<9x1x256xf32, #tpu.memory_space<vmem>>, vector<1x1x256xf32>
    %38 = vector.shape_cast %37 : vector<1x1x256xf32> to vector<1x256xf32>
    %39 = vector.broadcast %38 : vector<1x256xf32> to vector<8x256xf32>
    %40 = arith.mulf %36, %39 : vector<8x256xf32>
    %c0_22 = arith.constant 0 : index
    %c0_23 = arith.constant 0 : index
    %c0_24 = arith.constant 0 : index
    %41 = vector.load %arg9[%c0_22, %c0_23, %c0_24] : memref<9x8x8xbf16, #tpu.memory_space<vmem>>, vector<1x8x8xbf16>
    %42 = vector.shape_cast %41 : vector<1x8x8xbf16> to vector<8x8xbf16>
    %43 = arith.truncf %40 : vector<8x256xf32> to vector<8x256xbf16>
    %cst_25 = arith.constant dense<0.000000e+00> : vector<8x256xf32>
    %44 = tpu.matmul %42, %43, %cst_25 {dimension_numbers = #tpu.dot_dimension_numbers<[1], [0], [0], [1], [0, 0, 1, 1], [], []>} : vector<8x8xbf16>, vector<8x256xbf16>, vector<8x256xf32> -> vector<8x256xf32>
    %45 = arith.addf %35, %44 : vector<8x256xf32>
    %c16_i32 = arith.constant 16 : i32
    %46 = tpu.dynamic_rotate %34 by %c16_i32 dim 1 : vector<8x256xf32>, i32 -> vector<8x256xf32>
    %c1 = arith.constant 1 : index
    %c0_26 = arith.constant 0 : index
    %c0_27 = arith.constant 0 : index
    %47 = vector.load %arg2[%c1, %c0_26, %c0_27] : memref<9x1x256xf32, #tpu.memory_space<vmem>>, vector<1x1x256xf32>
    %48 = vector.shape_cast %47 : vector<1x1x256xf32> to vector<1x256xf32>
    %49 = vector.broadcast %48 : vector<1x256xf32> to vector<8x256xf32>
    %50 = arith.mulf %46, %49 : vector<8x256xf32>
    %c1_28 = arith.constant 1 : index
    %c0_29 = arith.constant 0 : index
    %c0_30 = arith.constant 0 : index
    %51 = vector.load %arg9[%c1_28, %c0_29, %c0_30] : memref<9x8x8xbf16, #tpu.memory_space<vmem>>, vector<1x8x8xbf16>
    %52 = vector.shape_cast %51 : vector<1x8x8xbf16> to vector<8x8xbf16>
    %53 = arith.truncf %50 : vector<8x256xf32> to vector<8x256xbf16>
    %cst_31 = arith.constant dense<0.000000e+00> : vector<8x256xf32>
    %54 = tpu.matmul %52, %53, %cst_31 {dimension_numbers = #tpu.dot_dimension_numbers<[1], [0], [0], [1], [0, 0, 1, 1], [], []>} : vector<8x8xbf16>, vector<8x256xbf16>, vector<8x256xf32> -> vector<8x256xf32>
    %55 = arith.addf %45, %54 : vector<8x256xf32>
    %c15_i32 = arith.constant 15 : i32
    %56 = tpu.dynamic_rotate %34 by %c15_i32 dim 1 : vector<8x256xf32>, i32 -> vector<8x256xf32>
    %c2 = arith.constant 2 : index
    %c0_32 = arith.constant 0 : index
    %c0_33 = arith.constant 0 : index
    %57 = vector.load %arg2[%c2, %c0_32, %c0_33] : memref<9x1x256xf32, #tpu.memory_space<vmem>>, vector<1x1x256xf32>
    %58 = vector.shape_cast %57 : vector<1x1x256xf32> to vector<1x256xf32>
    %59 = vector.broadcast %58 : vector<1x256xf32> to vector<8x256xf32>
    %60 = arith.mulf %56, %59 : vector<8x256xf32>
    %c2_34 = arith.constant 2 : index
    %c0_35 = arith.constant 0 : index
    %c0_36 = arith.constant 0 : index
    %61 = vector.load %arg9[%c2_34, %c0_35, %c0_36] : memref<9x8x8xbf16, #tpu.memory_space<vmem>>, vector<1x8x8xbf16>
    %62 = vector.shape_cast %61 : vector<1x8x8xbf16> to vector<8x8xbf16>
    %63 = arith.truncf %60 : vector<8x256xf32> to vector<8x256xbf16>
    %cst_37 = arith.constant dense<0.000000e+00> : vector<8x256xf32>
    %64 = tpu.matmul %62, %63, %cst_37 {dimension_numbers = #tpu.dot_dimension_numbers<[1], [0], [0], [1], [0, 0, 1, 1], [], []>} : vector<8x8xbf16>, vector<8x256xbf16>, vector<8x256xf32> -> vector<8x256xf32>
    %65 = arith.addf %55, %64 : vector<8x256xf32>
    %c1_i32 = arith.constant 1 : i32
    %66 = tpu.dynamic_rotate %34 by %c1_i32 dim 1 : vector<8x256xf32>, i32 -> vector<8x256xf32>
    %c3 = arith.constant 3 : index
    %c0_38 = arith.constant 0 : index
    %c0_39 = arith.constant 0 : index
    %67 = vector.load %arg2[%c3, %c0_38, %c0_39] : memref<9x1x256xf32, #tpu.memory_space<vmem>>, vector<1x1x256xf32>
    %68 = vector.shape_cast %67 : vector<1x1x256xf32> to vector<1x256xf32>
    %69 = vector.broadcast %68 : vector<1x256xf32> to vector<8x256xf32>
    %70 = arith.mulf %66, %69 : vector<8x256xf32>
    %c3_40 = arith.constant 3 : index
    %c0_41 = arith.constant 0 : index
    %c0_42 = arith.constant 0 : index
    %71 = vector.load %arg9[%c3_40, %c0_41, %c0_42] : memref<9x8x8xbf16, #tpu.memory_space<vmem>>, vector<1x8x8xbf16>
    %72 = vector.shape_cast %71 : vector<1x8x8xbf16> to vector<8x8xbf16>
    %73 = arith.truncf %70 : vector<8x256xf32> to vector<8x256xbf16>
    %cst_43 = arith.constant dense<0.000000e+00> : vector<8x256xf32>
    %74 = tpu.matmul %72, %73, %cst_43 {dimension_numbers = #tpu.dot_dimension_numbers<[1], [0], [0], [1], [0, 0, 1, 1], [], []>} : vector<8x8xbf16>, vector<8x256xbf16>, vector<8x256xf32> -> vector<8x256xf32>
    %75 = arith.addf %65, %74 : vector<8x256xf32>
    %c4 = arith.constant 4 : index
    %c0_44 = arith.constant 0 : index
    %c0_45 = arith.constant 0 : index
    %76 = vector.load %arg9[%c4, %c0_44, %c0_45] : memref<9x8x8xbf16, #tpu.memory_space<vmem>>, vector<1x8x8xbf16>
    %77 = vector.shape_cast %76 : vector<1x8x8xbf16> to vector<8x8xbf16>
    %78 = arith.truncf %34 : vector<8x256xf32> to vector<8x256xbf16>
    %cst_46 = arith.constant dense<0.000000e+00> : vector<8x256xf32>
    %79 = tpu.matmul %77, %78, %cst_46 {dimension_numbers = #tpu.dot_dimension_numbers<[1], [0], [0], [1], [0, 0, 1, 1], [], []>} : vector<8x8xbf16>, vector<8x256xbf16>, vector<8x256xf32> -> vector<8x256xf32>
    %80 = arith.addf %75, %79 : vector<8x256xf32>
    %c255_i32 = arith.constant 255 : i32
    %81 = tpu.dynamic_rotate %34 by %c255_i32 dim 1 : vector<8x256xf32>, i32 -> vector<8x256xf32>
    %c5 = arith.constant 5 : index
    %c0_47 = arith.constant 0 : index
    %c0_48 = arith.constant 0 : index
    %82 = vector.load %arg2[%c5, %c0_47, %c0_48] : memref<9x1x256xf32, #tpu.memory_space<vmem>>, vector<1x1x256xf32>
    %83 = vector.shape_cast %82 : vector<1x1x256xf32> to vector<1x256xf32>
    %84 = vector.broadcast %83 : vector<1x256xf32> to vector<8x256xf32>
    %85 = arith.mulf %81, %84 : vector<8x256xf32>
    %c5_49 = arith.constant 5 : index
    %c0_50 = arith.constant 0 : index
    %c0_51 = arith.constant 0 : index
    %86 = vector.load %arg9[%c5_49, %c0_50, %c0_51] : memref<9x8x8xbf16, #tpu.memory_space<vmem>>, vector<1x8x8xbf16>
    %87 = vector.shape_cast %86 : vector<1x8x8xbf16> to vector<8x8xbf16>
    %88 = arith.truncf %85 : vector<8x256xf32> to vector<8x256xbf16>
    %cst_52 = arith.constant dense<0.000000e+00> : vector<8x256xf32>
    %89 = tpu.matmul %87, %88, %cst_52 {dimension_numbers = #tpu.dot_dimension_numbers<[1], [0], [0], [1], [0, 0, 1, 1], [], []>} : vector<8x8xbf16>, vector<8x256xbf16>, vector<8x256xf32> -> vector<8x256xf32>
    %90 = arith.addf %80, %89 : vector<8x256xf32>
    %c241_i32 = arith.constant 241 : i32
    %91 = tpu.dynamic_rotate %34 by %c241_i32 dim 1 : vector<8x256xf32>, i32 -> vector<8x256xf32>
    %c6 = arith.constant 6 : index
    %c0_53 = arith.constant 0 : index
    %c0_54 = arith.constant 0 : index
    %92 = vector.load %arg2[%c6, %c0_53, %c0_54] : memref<9x1x256xf32, #tpu.memory_space<vmem>>, vector<1x1x256xf32>
    %93 = vector.shape_cast %92 : vector<1x1x256xf32> to vector<1x256xf32>
    %94 = vector.broadcast %93 : vector<1x256xf32> to vector<8x256xf32>
    %95 = arith.mulf %91, %94 : vector<8x256xf32>
    %c6_55 = arith.constant 6 : index
    %c0_56 = arith.constant 0 : index
    %c0_57 = arith.constant 0 : index
    %96 = vector.load %arg9[%c6_55, %c0_56, %c0_57] : memref<9x8x8xbf16, #tpu.memory_space<vmem>>, vector<1x8x8xbf16>
    %97 = vector.shape_cast %96 : vector<1x8x8xbf16> to vector<8x8xbf16>
    %98 = arith.truncf %95 : vector<8x256xf32> to vector<8x256xbf16>
    %cst_58 = arith.constant dense<0.000000e+00> : vector<8x256xf32>
    %99 = tpu.matmul %97, %98, %cst_58 {dimension_numbers = #tpu.dot_dimension_numbers<[1], [0], [0], [1], [0, 0, 1, 1], [], []>} : vector<8x8xbf16>, vector<8x256xbf16>, vector<8x256xf32> -> vector<8x256xf32>
    %100 = arith.addf %90, %99 : vector<8x256xf32>
    %c240_i32 = arith.constant 240 : i32
    %101 = tpu.dynamic_rotate %34 by %c240_i32 dim 1 : vector<8x256xf32>, i32 -> vector<8x256xf32>
    %c7 = arith.constant 7 : index
    %c0_59 = arith.constant 0 : index
    %c0_60 = arith.constant 0 : index
    %102 = vector.load %arg2[%c7, %c0_59, %c0_60] : memref<9x1x256xf32, #tpu.memory_space<vmem>>, vector<1x1x256xf32>
    %103 = vector.shape_cast %102 : vector<1x1x256xf32> to vector<1x256xf32>
    %104 = vector.broadcast %103 : vector<1x256xf32> to vector<8x256xf32>
    %105 = arith.mulf %101, %104 : vector<8x256xf32>
    %c7_61 = arith.constant 7 : index
    %c0_62 = arith.constant 0 : index
    %c0_63 = arith.constant 0 : index
    %106 = vector.load %arg9[%c7_61, %c0_62, %c0_63] : memref<9x8x8xbf16, #tpu.memory_space<vmem>>, vector<1x8x8xbf16>
    %107 = vector.shape_cast %106 : vector<1x8x8xbf16> to vector<8x8xbf16>
    %108 = arith.truncf %105 : vector<8x256xf32> to vector<8x256xbf16>
    %cst_64 = arith.constant dense<0.000000e+00> : vector<8x256xf32>
    %109 = tpu.matmul %107, %108, %cst_64 {dimension_numbers = #tpu.dot_dimension_numbers<[1], [0], [0], [1], [0, 0, 1, 1], [], []>} : vector<8x8xbf16>, vector<8x256xbf16>, vector<8x256xf32> -> vector<8x256xf32>
    %110 = arith.addf %100, %109 : vector<8x256xf32>
    %c239_i32 = arith.constant 239 : i32
    %111 = tpu.dynamic_rotate %34 by %c239_i32 dim 1 : vector<8x256xf32>, i32 -> vector<8x256xf32>
    %c8 = arith.constant 8 : index
    %c0_65 = arith.constant 0 : index
    %c0_66 = arith.constant 0 : index
    %112 = vector.load %arg2[%c8, %c0_65, %c0_66] : memref<9x1x256xf32, #tpu.memory_space<vmem>>, vector<1x1x256xf32>
    %113 = vector.shape_cast %112 : vector<1x1x256xf32> to vector<1x256xf32>
    %114 = vector.broadcast %113 : vector<1x256xf32> to vector<8x256xf32>
    %115 = arith.mulf %111, %114 : vector<8x256xf32>
    %c8_67 = arith.constant 8 : index
    %c0_68 = arith.constant 0 : index
    %c0_69 = arith.constant 0 : index
    %116 = vector.load %arg9[%c8_67, %c0_68, %c0_69] : memref<9x8x8xbf16, #tpu.memory_space<vmem>>, vector<1x8x8xbf16>
    %117 = vector.shape_cast %116 : vector<1x8x8xbf16> to vector<8x8xbf16>
    %118 = arith.truncf %115 : vector<8x256xf32> to vector<8x256xbf16>
    %cst_70 = arith.constant dense<0.000000e+00> : vector<8x256xf32>
    %119 = tpu.matmul %117, %118, %cst_70 {dimension_numbers = #tpu.dot_dimension_numbers<[1], [0], [0], [1], [0, 0, 1, 1], [], []>} : vector<8x8xbf16>, vector<8x256xbf16>, vector<8x256xf32> -> vector<8x256xf32>
    %120 = arith.addf %110, %119 : vector<8x256xf32>
    %c0_71 = arith.constant 0 : index
    %c0_72 = arith.constant 0 : index
    %121 = vector.load %arg10[%c0_71, %c0_72] : memref<8x1xf32, #tpu.memory_space<vmem>>, vector<8x1xf32>
    %122 = vector.broadcast %121 : vector<8x1xf32> to vector<8x256xf32>
    %123 = arith.addf %120, %122 : vector<8x256xf32>
    %124 = arith.negf %123 : vector<8x256xf32>
    %125 = math.exp %124 : vector<8x256xf32>
    %cst_73 = arith.constant 1.000000e+00 : f32
    %126 = vector.broadcast %cst_73 : f32 to vector<8x256xf32>
    %127 = arith.addf %126, %125 : vector<8x256xf32>
    %128 = arith.divf %126, %127 : vector<8x256xf32>
    %129 = arith.mulf %123, %128 : vector<8x256xf32>
    %130 = arith.addf %129, %11 : vector<8x256xf32>
    %131 = arith.truncf %130 : vector<8x256xf32> to vector<8x256xbf16>
    %c0_74 = arith.constant 0 : index
    %c0_75 = arith.constant 0 : index
    %132 = vector.load %arg11[%c0_74, %c0_75] : memref<8x8xbf16, #tpu.memory_space<vmem>>, vector<8x8xbf16>
    %cst_76 = arith.constant dense<0.000000e+00> : vector<8x256xf32>
    %133 = tpu.matmul %132, %131, %cst_76 {dimension_numbers = #tpu.dot_dimension_numbers<[1], [0], [0], [1], [0, 0, 1, 1], [], []>} : vector<8x8xbf16>, vector<8x256xbf16>, vector<8x256xf32> -> vector<8x256xf32>
    %c0_77 = arith.constant 0 : index
    %c0_78 = arith.constant 0 : index
    %134 = vector.load %arg12[%c0_77, %c0_78] : memref<8x1xf32, #tpu.memory_space<vmem>>, vector<8x1xf32>
    %135 = vector.broadcast %134 : vector<8x1xf32> to vector<8x256xf32>
    %136 = arith.addf %133, %135 : vector<8x256xf32>
    %137 = arith.negf %136 : vector<8x256xf32>
    %138 = math.exp %137 : vector<8x256xf32>
    %cst_79 = arith.constant 1.000000e+00 : f32
    %139 = vector.broadcast %cst_79 : f32 to vector<8x256xf32>
    %140 = arith.addf %139, %138 : vector<8x256xf32>
    %141 = arith.divf %139, %140 : vector<8x256xf32>
    %142 = arith.mulf %136, %141 : vector<8x256xf32>
    %cst_80 = arith.constant 0.000000e+00 : f32
    %143 = vector.broadcast %cst_80 : f32 to vector<8x256xf32>
    %c17_i32_81 = arith.constant 17 : i32
    %144 = tpu.dynamic_rotate %142 by %c17_i32_81 dim 1 : vector<8x256xf32>, i32 -> vector<8x256xf32>
    %c0_82 = arith.constant 0 : index
    %c0_83 = arith.constant 0 : index
    %c0_84 = arith.constant 0 : index
    %145 = vector.load %arg2[%c0_82, %c0_83, %c0_84] : memref<9x1x256xf32, #tpu.memory_space<vmem>>, vector<1x1x256xf32>
    %146 = vector.shape_cast %145 : vector<1x1x256xf32> to vector<1x256xf32>
    %147 = vector.broadcast %146 : vector<1x256xf32> to vector<8x256xf32>
    %148 = arith.mulf %144, %147 : vector<8x256xf32>
    %c0_85 = arith.constant 0 : index
    %c0_86 = arith.constant 0 : index
    %c0_87 = arith.constant 0 : index
    %149 = vector.load %arg13[%c0_85, %c0_86, %c0_87] : memref<9x8x8xbf16, #tpu.memory_space<vmem>>, vector<1x8x8xbf16>
    %150 = vector.shape_cast %149 : vector<1x8x8xbf16> to vector<8x8xbf16>
    %151 = arith.truncf %148 : vector<8x256xf32> to vector<8x256xbf16>
    %cst_88 = arith.constant dense<0.000000e+00> : vector<8x256xf32>
    %152 = tpu.matmul %150, %151, %cst_88 {dimension_numbers = #tpu.dot_dimension_numbers<[1], [0], [0], [1], [0, 0, 1, 1], [], []>} : vector<8x8xbf16>, vector<8x256xbf16>, vector<8x256xf32> -> vector<8x256xf32>
    %153 = arith.addf %143, %152 : vector<8x256xf32>
    %c16_i32_89 = arith.constant 16 : i32
    %154 = tpu.dynamic_rotate %142 by %c16_i32_89 dim 1 : vector<8x256xf32>, i32 -> vector<8x256xf32>
    %c1_90 = arith.constant 1 : index
    %c0_91 = arith.constant 0 : index
    %c0_92 = arith.constant 0 : index
    %155 = vector.load %arg2[%c1_90, %c0_91, %c0_92] : memref<9x1x256xf32, #tpu.memory_space<vmem>>, vector<1x1x256xf32>
    %156 = vector.shape_cast %155 : vector<1x1x256xf32> to vector<1x256xf32>
    %157 = vector.broadcast %156 : vector<1x256xf32> to vector<8x256xf32>
    %158 = arith.mulf %154, %157 : vector<8x256xf32>
    %c1_93 = arith.constant 1 : index
    %c0_94 = arith.constant 0 : index
    %c0_95 = arith.constant 0 : index
    %159 = vector.load %arg13[%c1_93, %c0_94, %c0_95] : memref<9x8x8xbf16, #tpu.memory_space<vmem>>, vector<1x8x8xbf16>
    %160 = vector.shape_cast %159 : vector<1x8x8xbf16> to vector<8x8xbf16>
    %161 = arith.truncf %158 : vector<8x256xf32> to vector<8x256xbf16>
    %cst_96 = arith.constant dense<0.000000e+00> : vector<8x256xf32>
    %162 = tpu.matmul %160, %161, %cst_96 {dimension_numbers = #tpu.dot_dimension_numbers<[1], [0], [0], [1], [0, 0, 1, 1], [], []>} : vector<8x8xbf16>, vector<8x256xbf16>, vector<8x256xf32> -> vector<8x256xf32>
    %163 = arith.addf %153, %162 : vector<8x256xf32>
    %c15_i32_97 = arith.constant 15 : i32
    %164 = tpu.dynamic_rotate %142 by %c15_i32_97 dim 1 : vector<8x256xf32>, i32 -> vector<8x256xf32>
    %c2_98 = arith.constant 2 : index
    %c0_99 = arith.constant 0 : index
    %c0_100 = arith.constant 0 : index
    %165 = vector.load %arg2[%c2_98, %c0_99, %c0_100] : memref<9x1x256xf32, #tpu.memory_space<vmem>>, vector<1x1x256xf32>
    %166 = vector.shape_cast %165 : vector<1x1x256xf32> to vector<1x256xf32>
    %167 = vector.broadcast %166 : vector<1x256xf32> to vector<8x256xf32>
    %168 = arith.mulf %164, %167 : vector<8x256xf32>
    %c2_101 = arith.constant 2 : index
    %c0_102 = arith.constant 0 : index
    %c0_103 = arith.constant 0 : index
    %169 = vector.load %arg13[%c2_101, %c0_102, %c0_103] : memref<9x8x8xbf16, #tpu.memory_space<vmem>>, vector<1x8x8xbf16>
    %170 = vector.shape_cast %169 : vector<1x8x8xbf16> to vector<8x8xbf16>
    %171 = arith.truncf %168 : vector<8x256xf32> to vector<8x256xbf16>
    %cst_104 = arith.constant dense<0.000000e+00> : vector<8x256xf32>
    %172 = tpu.matmul %170, %171, %cst_104 {dimension_numbers = #tpu.dot_dimension_numbers<[1], [0], [0], [1], [0, 0, 1, 1], [], []>} : vector<8x8xbf16>, vector<8x256xbf16>, vector<8x256xf32> -> vector<8x256xf32>
    %173 = arith.addf %163, %172 : vector<8x256xf32>
    %c1_i32_105 = arith.constant 1 : i32
    %174 = tpu.dynamic_rotate %142 by %c1_i32_105 dim 1 : vector<8x256xf32>, i32 -> vector<8x256xf32>
    %c3_106 = arith.constant 3 : index
    %c0_107 = arith.constant 0 : index
    %c0_108 = arith.constant 0 : index
    %175 = vector.load %arg2[%c3_106, %c0_107, %c0_108] : memref<9x1x256xf32, #tpu.memory_space<vmem>>, vector<1x1x256xf32>
    %176 = vector.shape_cast %175 : vector<1x1x256xf32> to vector<1x256xf32>
    %177 = vector.broadcast %176 : vector<1x256xf32> to vector<8x256xf32>
    %178 = arith.mulf %174, %177 : vector<8x256xf32>
    %c3_109 = arith.constant 3 : index
    %c0_110 = arith.constant 0 : index
    %c0_111 = arith.constant 0 : index
    %179 = vector.load %arg13[%c3_109, %c0_110, %c0_111] : memref<9x8x8xbf16, #tpu.memory_space<vmem>>, vector<1x8x8xbf16>
    %180 = vector.shape_cast %179 : vector<1x8x8xbf16> to vector<8x8xbf16>
    %181 = arith.truncf %178 : vector<8x256xf32> to vector<8x256xbf16>
    %cst_112 = arith.constant dense<0.000000e+00> : vector<8x256xf32>
    %182 = tpu.matmul %180, %181, %cst_112 {dimension_numbers = #tpu.dot_dimension_numbers<[1], [0], [0], [1], [0, 0, 1, 1], [], []>} : vector<8x8xbf16>, vector<8x256xbf16>, vector<8x256xf32> -> vector<8x256xf32>
    %183 = arith.addf %173, %182 : vector<8x256xf32>
    %c4_113 = arith.constant 4 : index
    %c0_114 = arith.constant 0 : index
    %c0_115 = arith.constant 0 : index
    %184 = vector.load %arg13[%c4_113, %c0_114, %c0_115] : memref<9x8x8xbf16, #tpu.memory_space<vmem>>, vector<1x8x8xbf16>
    %185 = vector.shape_cast %184 : vector<1x8x8xbf16> to vector<8x8xbf16>
    %186 = arith.truncf %142 : vector<8x256xf32> to vector<8x256xbf16>
    %cst_116 = arith.constant dense<0.000000e+00> : vector<8x256xf32>
    %187 = tpu.matmul %185, %186, %cst_116 {dimension_numbers = #tpu.dot_dimension_numbers<[1], [0], [0], [1], [0, 0, 1, 1], [], []>} : vector<8x8xbf16>, vector<8x256xbf16>, vector<8x256xf32> -> vector<8x256xf32>
    %188 = arith.addf %183, %187 : vector<8x256xf32>
    %c255_i32_117 = arith.constant 255 : i32
    %189 = tpu.dynamic_rotate %142 by %c255_i32_117 dim 1 : vector<8x256xf32>, i32 -> vector<8x256xf32>
    %c5_118 = arith.constant 5 : index
    %c0_119 = arith.constant 0 : index
    %c0_120 = arith.constant 0 : index
    %190 = vector.load %arg2[%c5_118, %c0_119, %c0_120] : memref<9x1x256xf32, #tpu.memory_space<vmem>>, vector<1x1x256xf32>
    %191 = vector.shape_cast %190 : vector<1x1x256xf32> to vector<1x256xf32>
    %192 = vector.broadcast %191 : vector<1x256xf32> to vector<8x256xf32>
    %193 = arith.mulf %189, %192 : vector<8x256xf32>
    %c5_121 = arith.constant 5 : index
    %c0_122 = arith.constant 0 : index
    %c0_123 = arith.constant 0 : index
    %194 = vector.load %arg13[%c5_121, %c0_122, %c0_123] : memref<9x8x8xbf16, #tpu.memory_space<vmem>>, vector<1x8x8xbf16>
    %195 = vector.shape_cast %194 : vector<1x8x8xbf16> to vector<8x8xbf16>
    %196 = arith.truncf %193 : vector<8x256xf32> to vector<8x256xbf16>
    %cst_124 = arith.constant dense<0.000000e+00> : vector<8x256xf32>
    %197 = tpu.matmul %195, %196, %cst_124 {dimension_numbers = #tpu.dot_dimension_numbers<[1], [0], [0], [1], [0, 0, 1, 1], [], []>} : vector<8x8xbf16>, vector<8x256xbf16>, vector<8x256xf32> -> vector<8x256xf32>
    %198 = arith.addf %188, %197 : vector<8x256xf32>
    %c241_i32_125 = arith.constant 241 : i32
    %199 = tpu.dynamic_rotate %142 by %c241_i32_125 dim 1 : vector<8x256xf32>, i32 -> vector<8x256xf32>
    %c6_126 = arith.constant 6 : index
    %c0_127 = arith.constant 0 : index
    %c0_128 = arith.constant 0 : index
    %200 = vector.load %arg2[%c6_126, %c0_127, %c0_128] : memref<9x1x256xf32, #tpu.memory_space<vmem>>, vector<1x1x256xf32>
    %201 = vector.shape_cast %200 : vector<1x1x256xf32> to vector<1x256xf32>
    %202 = vector.broadcast %201 : vector<1x256xf32> to vector<8x256xf32>
    %203 = arith.mulf %199, %202 : vector<8x256xf32>
    %c6_129 = arith.constant 6 : index
    %c0_130 = arith.constant 0 : index
    %c0_131 = arith.constant 0 : index
    %204 = vector.load %arg13[%c6_129, %c0_130, %c0_131] : memref<9x8x8xbf16, #tpu.memory_space<vmem>>, vector<1x8x8xbf16>
    %205 = vector.shape_cast %204 : vector<1x8x8xbf16> to vector<8x8xbf16>
    %206 = arith.truncf %203 : vector<8x256xf32> to vector<8x256xbf16>
    %cst_132 = arith.constant dense<0.000000e+00> : vector<8x256xf32>
    %207 = tpu.matmul %205, %206, %cst_132 {dimension_numbers = #tpu.dot_dimension_numbers<[1], [0], [0], [1], [0, 0, 1, 1], [], []>} : vector<8x8xbf16>, vector<8x256xbf16>, vector<8x256xf32> -> vector<8x256xf32>
    %208 = arith.addf %198, %207 : vector<8x256xf32>
    %c240_i32_133 = arith.constant 240 : i32
    %209 = tpu.dynamic_rotate %142 by %c240_i32_133 dim 1 : vector<8x256xf32>, i32 -> vector<8x256xf32>
    %c7_134 = arith.constant 7 : index
    %c0_135 = arith.constant 0 : index
    %c0_136 = arith.constant 0 : index
    %210 = vector.load %arg2[%c7_134, %c0_135, %c0_136] : memref<9x1x256xf32, #tpu.memory_space<vmem>>, vector<1x1x256xf32>
    %211 = vector.shape_cast %210 : vector<1x1x256xf32> to vector<1x256xf32>
    %212 = vector.broadcast %211 : vector<1x256xf32> to vector<8x256xf32>
    %213 = arith.mulf %209, %212 : vector<8x256xf32>
    %c7_137 = arith.constant 7 : index
    %c0_138 = arith.constant 0 : index
    %c0_139 = arith.constant 0 : index
    %214 = vector.load %arg13[%c7_137, %c0_138, %c0_139] : memref<9x8x8xbf16, #tpu.memory_space<vmem>>, vector<1x8x8xbf16>
    %215 = vector.shape_cast %214 : vector<1x8x8xbf16> to vector<8x8xbf16>
    %216 = arith.truncf %213 : vector<8x256xf32> to vector<8x256xbf16>
    %cst_140 = arith.constant dense<0.000000e+00> : vector<8x256xf32>
    %217 = tpu.matmul %215, %216, %cst_140 {dimension_numbers = #tpu.dot_dimension_numbers<[1], [0], [0], [1], [0, 0, 1, 1], [], []>} : vector<8x8xbf16>, vector<8x256xbf16>, vector<8x256xf32> -> vector<8x256xf32>
    %218 = arith.addf %208, %217 : vector<8x256xf32>
    %c239_i32_141 = arith.constant 239 : i32
    %219 = tpu.dynamic_rotate %142 by %c239_i32_141 dim 1 : vector<8x256xf32>, i32 -> vector<8x256xf32>
    %c8_142 = arith.constant 8 : index
    %c0_143 = arith.constant 0 : index
    %c0_144 = arith.constant 0 : index
    %220 = vector.load %arg2[%c8_142, %c0_143, %c0_144] : memref<9x1x256xf32, #tpu.memory_space<vmem>>, vector<1x1x256xf32>
    %221 = vector.shape_cast %220 : vector<1x1x256xf32> to vector<1x256xf32>
    %222 = vector.broadcast %221 : vector<1x256xf32> to vector<8x256xf32>
    %223 = arith.mulf %219, %222 : vector<8x256xf32>
    %c8_145 = arith.constant 8 : index
    %c0_146 = arith.constant 0 : index
    %c0_147 = arith.constant 0 : index
    %224 = vector.load %arg13[%c8_145, %c0_146, %c0_147] : memref<9x8x8xbf16, #tpu.memory_space<vmem>>, vector<1x8x8xbf16>
    %225 = vector.shape_cast %224 : vector<1x8x8xbf16> to vector<8x8xbf16>
    %226 = arith.truncf %223 : vector<8x256xf32> to vector<8x256xbf16>
    %cst_148 = arith.constant dense<0.000000e+00> : vector<8x256xf32>
    %227 = tpu.matmul %225, %226, %cst_148 {dimension_numbers = #tpu.dot_dimension_numbers<[1], [0], [0], [1], [0, 0, 1, 1], [], []>} : vector<8x8xbf16>, vector<8x256xbf16>, vector<8x256xf32> -> vector<8x256xf32>
    %228 = arith.addf %218, %227 : vector<8x256xf32>
    %c0_149 = arith.constant 0 : index
    %c0_150 = arith.constant 0 : index
    %229 = vector.load %arg14[%c0_149, %c0_150] : memref<8x1xf32, #tpu.memory_space<vmem>>, vector<8x1xf32>
    %230 = vector.broadcast %229 : vector<8x1xf32> to vector<8x256xf32>
    %231 = arith.addf %228, %230 : vector<8x256xf32>
    %232 = arith.negf %231 : vector<8x256xf32>
    %233 = math.exp %232 : vector<8x256xf32>
    %cst_151 = arith.constant 1.000000e+00 : f32
    %234 = vector.broadcast %cst_151 : f32 to vector<8x256xf32>
    %235 = arith.addf %234, %233 : vector<8x256xf32>
    %236 = arith.divf %234, %235 : vector<8x256xf32>
    %237 = arith.mulf %231, %236 : vector<8x256xf32>
    %238 = arith.addf %237, %130 : vector<8x256xf32>
    %c0_152 = arith.constant 0 : index
    %c0_153 = arith.constant 0 : index
    %239 = vector.load %arg15[%c0_152, %c0_153] : memref<16x8xbf16, #tpu.memory_space<vmem>>, vector<16x8xbf16>
    %240 = arith.truncf %238 : vector<8x256xf32> to vector<8x256xbf16>
    %cst_154 = arith.constant dense<0.000000e+00> : vector<16x256xf32>
    %241 = tpu.matmul %239, %240, %cst_154 {dimension_numbers = #tpu.dot_dimension_numbers<[1], [0], [0], [1], [0, 0, 1, 1], [], []>} : vector<16x8xbf16>, vector<8x256xbf16>, vector<16x256xf32> -> vector<16x256xf32>
    %c0_155 = arith.constant 0 : index
    %c0_156 = arith.constant 0 : index
    %242 = vector.load %arg16[%c0_155, %c0_156] : memref<16x8xbf16, #tpu.memory_space<vmem>>, vector<16x8xbf16>
    %243 = arith.truncf %22 : vector<8x256xf32> to vector<8x256xbf16>
    %cst_157 = arith.constant dense<0.000000e+00> : vector<16x256xf32>
    %244 = tpu.matmul %242, %243, %cst_157 {dimension_numbers = #tpu.dot_dimension_numbers<[1], [0], [0], [1], [0, 0, 1, 1], [], []>} : vector<16x8xbf16>, vector<8x256xbf16>, vector<16x256xf32> -> vector<16x256xf32>
    %245 = arith.addf %241, %244 : vector<16x256xf32>
    %c0_158 = arith.constant 0 : index
    %c0_159 = arith.constant 0 : index
    %246 = vector.load %arg17[%c0_158, %c0_159] : memref<16x1xf32, #tpu.memory_space<vmem>>, vector<16x1xf32>
    %247 = vector.broadcast %246 : vector<16x1xf32> to vector<16x256xf32>
    %248 = arith.addf %245, %247 : vector<16x256xf32>
    %249 = arith.negf %248 : vector<16x256xf32>
    %250 = math.exp %249 : vector<16x256xf32>
    %cst_160 = arith.constant 1.000000e+00 : f32
    %251 = vector.broadcast %cst_160 : f32 to vector<16x256xf32>
    %252 = arith.addf %251, %250 : vector<16x256xf32>
    %253 = arith.divf %251, %252 : vector<16x256xf32>
    %254 = arith.mulf %248, %253 : vector<16x256xf32>
    %c0_161 = arith.constant 0 : index
    %c0_162 = arith.constant 0 : index
    %255 = vector.load %arg18[%c0_161, %c0_162] : memref<16x256xf32, #tpu.memory_space<vmem>>, vector<16x256xf32>
    tpu.vector_store %arg18[%c0_161, %c0_162], %254 {strides = array<i32>} : memref<16x256xf32, #tpu.memory_space<vmem>>, vector<16x256xf32>,
    return
  }
  func.func @transform_0(%arg0: i32) -> (i32, i32) {
    %c0_i32 = arith.constant 0 : i32
    %c0_i32_0 = arith.constant 0 : i32
    return %c0_i32, %arg0 : i32, i32
  }
  func.func @transform_1(%arg0: i32) -> (i32, i32, i32) {
    %c0_i32 = arith.constant 0 : i32
    %c0_i32_0 = arith.constant 0 : i32
    %c0_i32_1 = arith.constant 0 : i32
    %c0_i32_2 = arith.constant 0 : i32
    return %c0_i32, %c0_i32_0, %c0_i32_1 : i32, i32, i32
  }
  func.func @transform_2(%arg0: i32) -> (i32, i32) {
    %c0_i32 = arith.constant 0 : i32
    %c0_i32_0 = arith.constant 0 : i32
    %c0_i32_1 = arith.constant 0 : i32
    return %c0_i32, %c0_i32_0 : i32, i32
  }
  func.func @transform_3(%arg0: i32) -> (i32, i32) {
    %c0_i32 = arith.constant 0 : i32
    %c0_i32_0 = arith.constant 0 : i32
    %c0_i32_1 = arith.constant 0 : i32
    return %c0_i32, %c0_i32_0 : i32, i32
  }
  func.func @transform_4(%arg0: i32) -> (i32, i32) {
    %c0_i32 = arith.constant 0 : i32
    %c0_i32_0 = arith.constant 0 : i32
    %c0_i32_1 = arith.constant 0 : i32
    return %c0_i32, %c0_i32_0 : i32, i32
  }
  func.func @transform_5(%arg0: i32) -> (i32, i32) {
    %c0_i32 = arith.constant 0 : i32
    %c0_i32_0 = arith.constant 0 : i32
    %c0_i32_1 = arith.constant 0 : i32
    return %c0_i32, %c0_i32_0 : i32, i32
  }
  func.func @transform_6(%arg0: i32) -> (i32, i32) {
    %c0_i32 = arith.constant 0 : i32
    %c0_i32_0 = arith.constant 0 : i32
    %c0_i32_1 = arith.constant 0 : i32
    return %c0_i32, %c0_i32_0 : i32, i32
  }
  func.func @transform_7(%arg0: i32) -> (i32, i32) {
    %c0_i32 = arith.constant 0 : i32
    %c0_i32_0 = arith.constant 0 : i32
    %c0_i32_1 = arith.constant 0 : i32
    return %c0_i32, %c0_i32_0 : i32, i32
  }
  func.func @transform_8(%arg0: i32) -> (i32, i32, i32) {
    %c0_i32 = arith.constant 0 : i32
    %c0_i32_0 = arith.constant 0 : i32
    %c0_i32_1 = arith.constant 0 : i32
    %c0_i32_2 = arith.constant 0 : i32
    return %c0_i32, %c0_i32_0, %c0_i32_1 : i32, i32, i32
  }
  func.func @transform_9(%arg0: i32) -> (i32, i32) {
    %c0_i32 = arith.constant 0 : i32
    %c0_i32_0 = arith.constant 0 : i32
    %c0_i32_1 = arith.constant 0 : i32
    return %c0_i32, %c0_i32_0 : i32, i32
  }
  func.func @transform_10(%arg0: i32) -> (i32, i32) {
    %c0_i32 = arith.constant 0 : i32
    %c0_i32_0 = arith.constant 0 : i32
    %c0_i32_1 = arith.constant 0 : i32
    return %c0_i32, %c0_i32_0 : i32, i32
  }
  func.func @transform_11(%arg0: i32) -> (i32, i32) {
    %c0_i32 = arith.constant 0 : i32
    %c0_i32_0 = arith.constant 0 : i32
    %c0_i32_1 = arith.constant 0 : i32
    return %c0_i32, %c0_i32_0 : i32, i32
  }
  func.func @transform_12(%arg0: i32) -> (i32, i32, i32) {
    %c0_i32 = arith.constant 0 : i32
    %c0_i32_0 = arith.constant 0 : i32
    %c0_i32_1 = arith.constant 0 : i32
    %c0_i32_2 = arith.constant 0 : i32
    return %c0_i32, %c0_i32_0, %c0_i32_1 : i32, i32, i32
  }
  func.func @transform_13(%arg0: i32) -> (i32, i32) {
    %c0_i32 = arith.constant 0 : i32
    %c0_i32_0 = arith.constant 0 : i32
    %c0_i32_1 = arith.constant 0 : i32
    return %c0_i32, %c0_i32_0 : i32, i32
  }
  func.func @transform_14(%arg0: i32) -> (i32, i32) {
    %c0_i32 = arith.constant 0 : i32
    %c0_i32_0 = arith.constant 0 : i32
    %c0_i32_1 = arith.constant 0 : i32
    return %c0_i32, %c0_i32_0 : i32, i32
  }
  func.func @transform_15(%arg0: i32) -> (i32, i32) {
    %c0_i32 = arith.constant 0 : i32
    %c0_i32_0 = arith.constant 0 : i32
    %c0_i32_1 = arith.constant 0 : i32
    return %c0_i32, %c0_i32_0 : i32, i32
  }
  func.func @transform_16(%arg0: i32) -> (i32, i32) {
    %c0_i32 = arith.constant 0 : i32
    %c0_i32_0 = arith.constant 0 : i32
    %c0_i32_1 = arith.constant 0 : i32
    return %c0_i32, %c0_i32_0 : i32, i32
  }
  func.func @transform_17(%arg0: i32) -> (i32, i32) {
    %c0_i32 = arith.constant 0 : i32
    %c0_i32_0 = arith.constant 0 : i32
    return %c0_i32, %arg0 : i32, i32
  }
}

</mosaic_0001>

<llo_original>
// kernel: _lambda_.1
$region0: #{_lambda_.1}
  #allocation0 [shape = 'u32[]', space=smem, size = 0x4, offset = 0x4, fixed_abs, tag = 'smem constant byte address 0x4 - core index']
  #allocation1 [shape = 'u32[144,128]{1,0:T(1,128)}', space=vmem, size = 0x12000, scoped, tag = 'internal scratch']
  %s0 = inlined_call_operand.vmem [shape: bf16[16,512], index: 0, kind: input, shape index: {}]
  %s1 = inlined_call_operand.vmem [shape: f32[9,1,256], index: 1, kind: input, shape index: {}]
  %s2 = inlined_call_operand.vmem [shape: bf16[8,16], index: 2, kind: input, shape index: {}]
  %s3 = inlined_call_operand.vmem [shape: f32[8,1], index: 3, kind: input, shape index: {}]
  %s4 = inlined_call_operand.vmem [shape: bf16[8,16], index: 4, kind: input, shape index: {}]
  %s5 = inlined_call_operand.vmem [shape: f32[8,1], index: 5, kind: input, shape index: {}]
  %s6 = inlined_call_operand.vmem [shape: bf16[8,8], index: 6, kind: input, shape index: {}]
  %s7 = inlined_call_operand.vmem [shape: f32[8,1], index: 7, kind: input, shape index: {}]
  %s8 = inlined_call_operand.vmem [shape: bf16[9,8,8], index: 8, kind: input, shape index: {}]
  %s9 = inlined_call_operand.vmem [shape: f32[8,1], index: 9, kind: input, shape index: {}]
  %s10 = inlined_call_operand.vmem [shape: bf16[8,8], index: 10, kind: input, shape index: {}]
  %s11 = inlined_call_operand.vmem [shape: f32[8,1], index: 11, kind: input, shape index: {}]
  %s12 = inlined_call_operand.vmem [shape: bf16[9,8,8], index: 12, kind: input, shape index: {}]
  %s13 = inlined_call_operand.vmem [shape: f32[8,1], index: 13, kind: input, shape index: {}]
  %s14 = inlined_call_operand.vmem [shape: bf16[16,8], index: 14, kind: input, shape index: {}]
  %s15 = inlined_call_operand.vmem [shape: bf16[16,8], index: 15, kind: input, shape index: {}]
  %s16 = inlined_call_operand.vmem [shape: f32[16,1], index: 16, kind: input, shape index: {}]
  %s17 = inlined_call_operand.vmem [shape: f32[16,512], index: 17, kind: output, shape index: {}]
  %s18 = sld [smem:[#allocation0]]
  $region158: #{_lambda_.1} parent=0
    _
  %s20 = ssub.s32 1, %s18
  %s21 = scalar_select 0, %s20, %s18
  $region1: #{_lambda_.1} parent=0
    #allocation2 [shape = 'u8[16384]{0}', space=vmem, size = 0x4000, scoped, tag = 'input window, operand 0']
    #allocation3 [shape = 'u8[32768]{0}', space=vmem, size = 0x8000, scoped, tag = 'output window, operand 0']
    loop: start=0, step=1, limit=4
    $region2: #{_lambda_.1} parent=1 // loop_pre_header
      _
    $region3: #{_lambda_.1} parent=1 // loop_header
      %s23 = sphi 0, %s27
      %p24 = scmp.ge.s32.totalorder %s23, 4
      %s33 = sphi 0, %s35
      %s36 = sphi 0, %s33
      %s37 = sphi 0, %s36
      %s53 = sphi 0, %s37
      %s57 = sphi 0, %s57
      %s59 = sphi 0, %s57
      %s60 = sphi 0, %s59
      %s74 = sphi 0, %s60
      %s78 = sphi 0, %s78
      %s80 = sphi 0, %s78
      %s81 = sphi 0, %s80
      %s95 = sphi 0, %s81
      %s99 = sphi 0, %s99
      %s101 = sphi 0, %s99
      %s102 = sphi 0, %s101
      %s116 = sphi 0, %s102
      %s120 = sphi 0, %s120
      %s122 = sphi 0, %s120
      %s123 = sphi 0, %s122
      %s137 = sphi 0, %s123
      %s141 = sphi 0, %s141
      %s143 = sphi 0, %s141
      %s144 = sphi 0, %s143
      %s158 = sphi 0, %s144
      %s162 = sphi 0, %s162
      %s164 = sphi 0, %s162
      %s165 = sphi 0, %s164
      %s179 = sphi 0, %s165
      %s183 = sphi 0, %s183
      %s185 = sphi 0, %s183
      %s186 = sphi 0, %s185
      %s200 = sphi 0, %s186
      %s204 = sphi 0, %s204
      %s206 = sphi 0, %s204
      %s207 = sphi 0, %s206
      %s221 = sphi 0, %s207
      %s225 = sphi 0, %s225
      %s227 = sphi 0, %s225
      %s228 = sphi 0, %s227
      %s242 = sphi 0, %s228
      %s246 = sphi 0, %s246
      %s248 = sphi 0, %s246
      %s249 = sphi 0, %s248
      %s263 = sphi 0, %s249
      %s267 = sphi 0, %s267
      %s269 = sphi 0, %s267
      %s270 = sphi 0, %s269
      %s284 = sphi 0, %s270
      %s288 = sphi 0, %s288
      %s290 = sphi 0, %s288
      %s291 = sphi 0, %s290
      %s305 = sphi 0, %s291
      %s309 = sphi 0, %s309
      %s311 = sphi 0, %s309
      %s312 = sphi 0, %s311
      %s326 = sphi 0, %s312
      %s330 = sphi 0, %s330
      %s332 = sphi 0, %s330
      %s333 = sphi 0, %s332
      %s347 = sphi 0, %s333
      %s351 = sphi 0, %s351
      %s353 = sphi 0, %s351
      %s354 = sphi 0, %s353
      %s368 = sphi 0, %s354
      %s372 = sphi 0, %s372
      %s374 = sphi 0, %s372
      %s375 = sphi 0, %s374
      %s389 = sphi 0, %s375
      %s395 = sphi 0, %s397
      %s398 = sphi 0, %s395
      %s399 = sphi 0, %s398
      %s415 = sphi 0, %s399
    $region4: #{_lambda_.1} parent=1 // loop_header_branch
      %26 = sbr.rel (%p24) target = $region8
    $region5: #{_lambda_.1} parent=1 // loop_body
      %s28 = ssub.s32 %s23, 1
      %s29 = ssub.s32 %s23, 2
      %s30 = sadd.s32 %s23, 1
      %s31 = ssub.s32 %s23, %s30
      %p32 = scmp.eq.s32.totalorder %s31, 0
      %s34 = sadd.s32 %s33, 1
      %s35 = scalar_select %p32, %s33, %s34
      %p38 = pneg %p32
      %p39 = scmp.eq.s32.totalorder %s23, 1
      %p40 = por %p38, %p39
      %p41 = scmp.ne.s32.totalorder %s33, %s36
      %p42 = scmp.eq.s32.totalorder %s23, 0
      %p43 = por %p41, %p42
      %p44 = scmp.ne.s32.totalorder %s33, %s36
      %p45 = scmp.eq.s32.totalorder %s28, 1
      %p46 = por %p44, %p45
      %p47 = scmp.ne.s32.totalorder %s36, %s37
      %p48 = scmp.eq.s32.totalorder %s28, 0
      %p49 = por %p47, %p48
      %p50 = scmp.ne.s32.totalorder %s36, %s37
      %p51 = scmp.eq.s32.totalorder %s29, 1
      %p52 = por %p50, %p51
      %p54 = scmp.ne.s32.totalorder %s37, %s53
      %p55 = scmp.eq.s32.totalorder %s29, 0
      %p56 = por %p54, %p55
      %s58 = sadd.s32 %s57, 1
      %p61 = scmp.eq.s32.totalorder %s23, 1
      %p62 = scmp.ne.s32.totalorder %s57, %s59
      %p63 = scmp.eq.s32.totalorder %s23, 0
      %p64 = por %p62, %p63
      %p65 = scmp.ne.s32.totalorder %s57, %s59
      %p66 = scmp.eq.s32.totalorder %s28, 1
      %p67 = por %p65, %p66
      %p68 = scmp.ne.s32.totalorder %s59, %s60
      %p69 = scmp.eq.s32.totalorder %s28, 0
      %p70 = por %p68, %p69
      %p71 = scmp.ne.s32.totalorder %s59, %s60
      %p72 = scmp.eq.s32.totalorder %s29, 1
      %p73 = por %p71, %p72
      %p75 = scmp.ne.s32.totalorder %s60, %s74
      %p76 = scmp.eq.s32.totalorder %s29, 0
      %p77 = por %p75, %p76
      %s79 = sadd.s32 %s78, 1
      %p82 = scmp.eq.s32.totalorder %s23, 1
      %p83 = scmp.ne.s32.totalorder %s78, %s80
      %p84 = scmp.eq.s32.totalorder %s23, 0
      %p85 = por %p83, %p84
      %p86 = scmp.ne.s32.totalorder %s78, %s80
      %p87 = scmp.eq.s32.totalorder %s28, 1
      %p88 = por %p86, %p87
      %p89 = scmp.ne.s32.totalorder %s80, %s81
      %p90 = scmp.eq.s32.totalorder %s28, 0
      %p91 = por %p89, %p90
      %p92 = scmp.ne.s32.totalorder %s80, %s81
      %p93 = scmp.eq.s32.totalorder %s29, 1
      %p94 = por %p92, %p93
      %p96 = scmp.ne.s32.totalorder %s81, %s95
      %p97 = scmp.eq.s32.totalorder %s29, 0
      %p98 = por %p96, %p97
      %s100 = sadd.s32 %s99, 1
      %p103 = scmp.eq.s32.totalorder %s23, 1
      %p104 = scmp.ne.s32.totalorder %s99, %s101
      %p105 = scmp.eq.s32.totalorder %s23, 0
      %p106 = por %p104, %p105
      %p107 = scmp.ne.s32.totalorder %s99, %s101
      %p108 = scmp.eq.s32.totalorder %s28, 1
      %p109 = por %p107, %p108
      %p110 = scmp.ne.s32.totalorder %s101, %s102
      %p111 = scmp.eq.s32.totalorder %s28, 0
      %p112 = por %p110, %p111
      %p113 = scmp.ne.s32.totalorder %s101, %s102
      %p114 = scmp.eq.s32.totalorder %s29, 1
      %p115 = por %p113, %p114
      %p117 = scmp.ne.s32.totalorder %s102, %s116
      %p118 = scmp.eq.s32.totalorder %s29, 0
      %p119 = por %p117, %p118
      %s121 = sadd.s32 %s120, 1
      %p124 = scmp.eq.s32.totalorder %s23, 1
      %p125 = scmp.ne.s32.totalorder %s120, %s122
      %p126 = scmp.eq.s32.totalorder %s23, 0
      %p127 = por %p125, %p126
      %p128 = scmp.ne.s32.totalorder %s120, %s122
      %p129 = scmp.eq.s32.totalorder %s28, 1
      %p130 = por %p128, %p129
      %p131 = scmp.ne.s32.totalorder %s122, %s123
      %p132 = scmp.eq.s32.totalorder %s28, 0
      %p133 = por %p131, %p132
      %p134 = scmp.ne.s32.totalorder %s122, %s123
      %p135 = scmp.eq.s32.totalorder %s29, 1
      %p136 = por %p134, %p135
      %p138 = scmp.ne.s32.totalorder %s123, %s137
      %p139 = scmp.eq.s32.totalorder %s29, 0
      %p140 = por %p138, %p139
      %s142 = sadd.s32 %s141, 1
      %p145 = scmp.eq.s32.totalorder %s23, 1
      %p146 = scmp.ne.s32.totalorder %s141, %s143
      %p147 = scmp.eq.s32.totalorder %s23, 0
      %p148 = por %p146, %p147
      %p149 = scmp.ne.s32.totalorder %s141, %s143
      %p150 = scmp.eq.s32.totalorder %s28, 1
      %p151 = por %p149, %p150
      %p152 = scmp.ne.s32.totalorder %s143, %s144
      %p153 = scmp.eq.s32.totalorder %s28, 0
      %p154 = por %p152, %p153
      %p155 = scmp.ne.s32.totalorder %s143, %s144
      %p156 = scmp.eq.s32.totalorder %s29, 1
      %p157 = por %p155, %p156
      %p159 = scmp.ne.s32.totalorder %s144, %s158
      %p160 = scmp.eq.s32.totalorder %s29, 0
      %p161 = por %p159, %p160
      %s163 = sadd.s32 %s162, 1
      %p166 = scmp.eq.s32.totalorder %s23, 1
      %p167 = scmp.ne.s32.totalorder %s162, %s164
      %p168 = scmp.eq.s32.totalorder %s23, 0
      %p169 = por %p167, %p168
      %p170 = scmp.ne.s32.totalorder %s162, %s164
      %p171 = scmp.eq.s32.totalorder %s28, 1
      %p172 = por %p170, %p171
      %p173 = scmp.ne.s32.totalorder %s164, %s165
      %p174 = scmp.eq.s32.totalorder %s28, 0
      %p175 = por %p173, %p174
      %p176 = scmp.ne.s32.totalorder %s164, %s165
      %p177 = scmp.eq.s32.totalorder %s29, 1
      %p178 = por %p176, %p177
      %p180 = scmp.ne.s32.totalorder %s165, %s179
      %p181 = scmp.eq.s32.totalorder %s29, 0
      %p182 = por %p180, %p181
      %s184 = sadd.s32 %s183, 1
      %p187 = scmp.eq.s32.totalorder %s23, 1
      %p188 = scmp.ne.s32.totalorder %s183, %s185
      %p189 = scmp.eq.s32.totalorder %s23, 0
      %p190 = por %p188, %p189
      %p191 = scmp.ne.s32.totalorder %s183, %s185
      %p192 = scmp.eq.s32.totalorder %s28, 1
      %p193 = por %p191, %p192
      %p194 = scmp.ne.s32.totalorder %s185, %s186
      %p195 = scmp.eq.s32.totalorder %s28, 0
      %p196 = por %p194, %p195
      %p197 = scmp.ne.s32.totalorder %s185, %s186
      %p198 = scmp.eq.s32.totalorder %s29, 1
      %p199 = por %p197, %p198
      %p201 = scmp.ne.s32.totalorder %s186, %s200
      %p202 = scmp.eq.s32.totalorder %s29, 0
      %p203 = por %p201, %p202
      %s205 = sadd.s32 %s204, 1
      %p208 = scmp.eq.s32.totalorder %s23, 1
      %p209 = scmp.ne.s32.totalorder %s204, %s206
      %p210 = scmp.eq.s32.totalorder %s23, 0
      %p211 = por %p209, %p210
      %p212 = scmp.ne.s32.totalorder %s204, %s206
      %p213 = scmp.eq.s32.totalorder %s28, 1
      %p214 = por %p212, %p213
      %p215 = scmp.ne.s32.totalorder %s206, %s207
      %p216 = scmp.eq.s32.totalorder %s28, 0
      %p217 = por %p215, %p216
      %p218 = scmp.ne.s32.totalorder %s206, %s207
      %p219 = scmp.eq.s32.totalorder %s29, 1
      %p220 = por %p218, %p219
      %p222 = scmp.ne.s32.totalorder %s207, %s221
      %p223 = scmp.eq.s32.totalorder %s29, 0
      %p224 = por %p222, %p223
      %s226 = sadd.s32 %s225, 1
      %p229 = scmp.eq.s32.totalorder %s23, 1
      %p230 = scmp.ne.s32.totalorder %s225, %s227
      %p231 = scmp.eq.s32.totalorder %s23, 0
      %p232 = por %p230, %p231
      %p233 = scmp.ne.s32.totalorder %s225, %s227
      %p234 = scmp.eq.s32.totalorder %s28, 1
      %p235 = por %p233, %p234
      %p236 = scmp.ne.s32.totalorder %s227, %s228
      %p237 = scmp.eq.s32.totalorder %s28, 0
      %p238 = por %p236, %p237
      %p239 = scmp.ne.s32.totalorder %s227, %s228
      %p240 = scmp.eq.s32.totalorder %s29, 1
      %p241 = por %p239, %p240
      %p243 = scmp.ne.s32.totalorder %s228, %s242
      %p244 = scmp.eq.s32.totalorder %s29, 0
      %p245 = por %p243, %p244
      %s247 = sadd.s32 %s246, 1
      %p250 = scmp.eq.s32.totalorder %s23, 1
      %p251 = scmp.ne.s32.totalorder %s246, %s248
      %p252 = scmp.eq.s32.totalorder %s23, 0
      %p253 = por %p251, %p252
      %p254 = scmp.ne.s32.totalorder %s246, %s248
      %p255 = scmp.eq.s32.totalorder %s28, 1
      %p256 = por %p254, %p255
      %p257 = scmp.ne.s32.totalorder %s248, %s249
      %p258 = scmp.eq.s32.totalorder %s28, 0
      %p259 = por %p257, %p258
      %p260 = scmp.ne.s32.totalorder %s248, %s249
      %p261 = scmp.eq.s32.totalorder %s29, 1
      %p262 = por %p260, %p261
      %p264 = scmp.ne.s32.totalorder %s249, %s263
      %p265 = scmp.eq.s32.totalorder %s29, 0
      %p266 = por %p264, %p265
      %s268 = sadd.s32 %s267, 1
      %p271 = scmp.eq.s32.totalorder %s23, 1
      %p272 = scmp.ne.s32.totalorder %s267, %s269
      %p273 = scmp.eq.s32.totalorder %s23, 0
      %p274 = por %p272, %p273
      %p275 = scmp.ne.s32.totalorder %s267, %s269
      %p276 = scmp.eq.s32.totalorder %s28, 1
      %p277 = por %p275, %p276
      %p278 = scmp.ne.s32.totalorder %s269, %s270
      %p279 = scmp.eq.s32.totalorder %s28, 0
      %p280 = por %p278, %p279
      %p281 = scmp.ne.s32.totalorder %s269, %s270
      %p282 = scmp.eq.s32.totalorder %s29, 1
      %p283 = por %p281, %p282
      %p285 = scmp.ne.s32.totalorder %s270, %s284
      %p286 = scmp.eq.s32.totalorder %s29, 0
      %p287 = por %p285, %p286
      %s289 = sadd.s32 %s288, 1
      %p292 = scmp.eq.s32.totalorder %s23, 1
      %p293 = scmp.ne.s32.totalorder %s288, %s290
      %p294 = scmp.eq.s32.totalorder %s23, 0
      %p295 = por %p293, %p294
      %p296 = scmp.ne.s32.totalorder %s288, %s290
      %p297 = scmp.eq.s32.totalorder %s28, 1
      %p298 = por %p296, %p297
      %p299 = scmp.ne.s32.totalorder %s290, %s291
      %p300 = scmp.eq.s32.totalorder %s28, 0
      %p301 = por %p299, %p300
      %p302 = scmp.ne.s32.totalorder %s290, %s291
      %p303 = scmp.eq.s32.totalorder %s29, 1
      %p304 = por %p302, %p303
      %p306 = scmp.ne.s32.totalorder %s291, %s305
      %p307 = scmp.eq.s32.totalorder %s29, 0
      %p308 = por %p306, %p307
      %s310 = sadd.s32 %s309, 1
      %p313 = scmp.eq.s32.totalorder %s23, 1
      %p314 = scmp.ne.s32.totalorder %s309, %s311
      %p315 = scmp.eq.s32.totalorder %s23, 0
      %p316 = por %p314, %p315
      %p317 = scmp.ne.s32.totalorder %s309, %s311
      %p318 = scmp.eq.s32.totalorder %s28, 1
      %p319 = por %p317, %p318
      %p320 = scmp.ne.s32.totalorder %s311, %s312
      %p321 = scmp.eq.s32.totalorder %s28, 0
      %p322 = por %p320, %p321
      %p323 = scmp.ne.s32.totalorder %s311, %s312
      %p324 = scmp.eq.s32.totalorder %s29, 1
      %p325 = por %p323, %p324
      %p327 = scmp.ne.s32.totalorder %s312, %s326
      %p328 = scmp.eq.s32.totalorder %s29, 0
      %p329 = por %p327, %p328
      %s331 = sadd.s32 %s330, 1
      %p334 = scmp.eq.s32.totalorder %s23, 1
      %p335 = scmp.ne.s32.totalorder %s330, %s332
      %p336 = scmp.eq.s32.totalorder %s23, 0
      %p337 = por %p335, %p336
      %p338 = scmp.ne.s32.totalorder %s330, %s332
      %p339 = scmp.eq.s32.totalorder %s28, 1
      %p340 = por %p338, %p339
      %p341 = scmp.ne.s32.totalorder %s332, %s333
      %p342 = scmp.eq.s32.totalorder %s28, 0
      %p343 = por %p341, %p342
      %p344 = scmp.ne.s32.totalorder %s332, %s333
      %p345 = scmp.eq.s32.totalorder %s29, 1
      %p346 = por %p344, %p345
      %p348 = scmp.ne.s32.totalorder %s333, %s347
      %p349 = scmp.eq.s32.totalorder %s29, 0
      %p350 = por %p348, %p349
      %s352 = sadd.s32 %s351, 1
      %p355 = scmp.eq.s32.totalorder %s23, 1
      %p356 = scmp.ne.s32.totalorder %s351, %s353
      %p357 = scmp.eq.s32.totalorder %s23, 0
      %p358 = por %p356, %p357
      %p359 = scmp.ne.s32.totalorder %s351, %s353
      %p360 = scmp.eq.s32.totalorder %s28, 1
      %p361 = por %p359, %p360
      %p362 = scmp.ne.s32.totalorder %s353, %s354
      %p363 = scmp.eq.s32.totalorder %s28, 0
      %p364 = por %p362, %p363
      %p365 = scmp.ne.s32.totalorder %s353, %s354
      %p366 = scmp.eq.s32.totalorder %s29, 1
      %p367 = por %p365, %p366
      %p369 = scmp.ne.s32.totalorder %s354, %s368
      %p370 = scmp.eq.s32.totalorder %s29, 0
      %p371 = por %p369, %p370
      %s373 = sadd.s32 %s372, 1
      %p376 = scmp.eq.s32.totalorder %s23, 1
      %p377 = scmp.ne.s32.totalorder %s372, %s374
      %p378 = scmp.eq.s32.totalorder %s23, 0
      %p379 = por %p377, %p378
      %p380 = scmp.ne.s32.totalorder %s372, %s374
      %p381 = scmp.eq.s32.totalorder %s28, 1
      %p382 = por %p380, %p381
      %p383 = scmp.ne.s32.totalorder %s374, %s375
      %p384 = scmp.eq.s32.totalorder %s28, 0
      %p385 = por %p383, %p384
      %p386 = scmp.ne.s32.totalorder %s374, %s375
      %p387 = scmp.eq.s32.totalorder %s29, 1
      %p388 = por %p386, %p387
      %p390 = scmp.ne.s32.totalorder %s375, %s389
      %p391 = scmp.eq.s32.totalorder %s29, 0
      %p392 = por %p390, %p391
      %s393 = ssub.s32 %s23, %s30
      %p394 = scmp.eq.s32.totalorder %s393, 0
      %s396 = sadd.s32 %s395, 1
      %s397 = scalar_select %p394, %s395, %s396
      %p400 = pneg %p394
      %p401 = scmp.eq.s32.totalorder %s23, 1
      %p402 = por %p400, %p401
      %p403 = scmp.ne.s32.totalorder %s395, %s398
      %p404 = scmp.eq.s32.totalorder %s23, 0
      %p405 = por %p403, %p404
      %p406 = scmp.ne.s32.totalorder %s395, %s398
      %p407 = scmp.eq.s32.totalorder %s28, 1
      %p408 = por %p406, %p407
      %p409 = scmp.ne.s32.totalorder %s398, %s399
      %p410 = scmp.eq.s32.totalorder %s28, 0
      %p411 = por %p409, %p410
      %p412 = scmp.ne.s32.totalorder %s398, %s399
      %p413 = scmp.eq.s32.totalorder %s29, 1
      %p414 = por %p412, %p413
      %p416 = scmp.ne.s32.totalorder %s399, %s415
      %p417 = scmp.eq.s32.totalorder %s29, 0
      %p418 = por %p416, %p417
      %p419 = scmp.le.s32.totalorder 1, %s23
      %p420 = scmp.lt.s32.totalorder %s23, 3
      %p421 = pnand %p419, %p420
      %p422 = pneg %p421
      // Predicated region
      $region9: #{_lambda_.1} parent=5 // pred_check
        _
      $region10: #{_lambda_.1} parent=5 // pred_check_branch
        %424 = sbr.rel (%p421) target = $region12
      $region11: #{_lambda_.1} parent=5 // pred_region
        %s425 = ssub.s32 %s23, 1
        // Predicated region
        $region13: #{_lambda_.1} parent=11 // pred_check
          %p426 = pneg %p70
        $region14: #{_lambda_.1} parent=11 // pred_check_branch
          %428 = sbr.rel (%p426) target = $region16
        $region15: #{_lambda_.1} parent=11 // pred_region
          _
        $region16: #{_lambda_.1} parent=11 // pred_fallthru
          _
        // Predicated region
        $region17: #{_lambda_.1} parent=11 // pred_check
          %p429 = pneg %p91
        $region18: #{_lambda_.1} parent=11 // pred_check_branch
          %431 = sbr.rel (%p429) target = $region20
        $region19: #{_lambda_.1} parent=11 // pred_region
          _
        $region20: #{_lambda_.1} parent=11 // pred_fallthru
          _
        // Predicated region
        $region21: #{_lambda_.1} parent=11 // pred_check
          %p432 = pneg %p112
        $region22: #{_lambda_.1} parent=11 // pred_check_branch
          %434 = sbr.rel (%p432) target = $region24
        $region23: #{_lambda_.1} parent=11 // pred_region
          _
        $region24: #{_lambda_.1} parent=11 // pred_fallthru
          _
        // Predicated region
        $region25: #{_lambda_.1} parent=11 // pred_check
          %p435 = pneg %p133
        $region26: #{_lambda_.1} parent=11 // pred_check_branch
          %437 = sbr.rel (%p435) target = $region28
        $region27: #{_lambda_.1} parent=11 // pred_region
          _
        $region28: #{_lambda_.1} parent=11 // pred_fallthru
          _
        // Predicated region
        $region29: #{_lambda_.1} parent=11 // pred_check
          %p438 = pneg %p154
        $region30: #{_lambda_.1} parent=11 // pred_check_branch
          %440 = sbr.rel (%p438) target = $region32
        $region31: #{_lambda_.1} parent=11 // pred_region
          _
        $region32: #{_lambda_.1} parent=11 // pred_fallthru
          _
        // Predicated region
        $region33: #{_lambda_.1} parent=11 // pred_check
          %p441 = pneg %p175
        $region34: #{_lambda_.1} parent=11 // pred_check_branch
          %443 = sbr.rel (%p441) target = $region36
        $region35: #{_lambda_.1} parent=11 // pred_region
          _
        $region36: #{_lambda_.1} parent=11 // pred_fallthru
          _
        // Predicated region
        $region37: #{_lambda_.1} parent=11 // pred_check
          %p444 = pneg %p196
        $region38: #{_lambda_.1} parent=11 // pred_check_branch
          %446 = sbr.rel (%p444) target = $region40
        $region39: #{_lambda_.1} parent=11 // pred_region
          _
        $region40: #{_lambda_.1} parent=11 // pred_fallthru
          _
        // Predicated region
        $region41: #{_lambda_.1} parent=11 // pred_check
          %p447 = pneg %p217
        $region42: #{_lambda_.1} parent=11 // pred_check_branch
          %449 = sbr.rel (%p447) target = $region44
        $region43: #{_lambda_.1} parent=11 // pred_region
          _
        $region44: #{_lambda_.1} parent=11 // pred_fallthru
          _
        // Predicated region
        $region45: #{_lambda_.1} parent=11 // pred_check
          %p450 = pneg %p238
        $region46: #{_lambda_.1} parent=11 // pred_check_branch
          %452 = sbr.rel (%p450) target = $region48
        $region47: #{_lambda_.1} parent=11 // pred_region
          _
        $region48: #{_lambda_.1} parent=11 // pred_fallthru
          _
        // Predicated region
        $region49: #{_lambda_.1} parent=11 // pred_check
          %p453 = pneg %p259
        $region50: #{_lambda_.1} parent=11 // pred_check_branch
          %455 = sbr.rel (%p453) target = $region52
        $region51: #{_lambda_.1} parent=11 // pred_region
          _
        $region52: #{_lambda_.1} parent=11 // pred_fallthru
          _
        // Predicated region
        $region53: #{_lambda_.1} parent=11 // pred_check
          %p456 = pneg %p280
        $region54: #{_lambda_.1} parent=11 // pred_check_branch
          %458 = sbr.rel (%p456) target = $region56
        $region55: #{_lambda_.1} parent=11 // pred_region
          _
        $region56: #{_lambda_.1} parent=11 // pred_fallthru
          _
        // Predicated region
        $region57: #{_lambda_.1} parent=11 // pred_check
          %p459 = pneg %p301
        $region58: #{_lambda_.1} parent=11 // pred_check_branch
          %461 = sbr.rel (%p459) target = $region60
        $region59: #{_lambda_.1} parent=11 // pred_region
          _
        $region60: #{_lambda_.1} parent=11 // pred_fallthru
          _
        // Predicated region
        $region61: #{_lambda_.1} parent=11 // pred_check
          %p462 = pneg %p322
        $region62: #{_lambda_.1} parent=11 // pred_check_branch
          %464 = sbr.rel (%p462) target = $region64
        $region63: #{_lambda_.1} parent=11 // pred_region
          _
        $region64: #{_lambda_.1} parent=11 // pred_fallthru
          _
        // Predicated region
        $region65: #{_lambda_.1} parent=11 // pred_check
          %p465 = pneg %p343
        $region66: #{_lambda_.1} parent=11 // pred_check_branch
          %467 = sbr.rel (%p465) target = $region68
        $region67: #{_lambda_.1} parent=11 // pred_region
          _
        $region68: #{_lambda_.1} parent=11 // pred_fallthru
          _
        // Predicated region
        $region69: #{_lambda_.1} parent=11 // pred_check
          %p468 = pneg %p364
        $region70: #{_lambda_.1} parent=11 // pred_check_branch
          %470 = sbr.rel (%p468) target = $region72
        $region71: #{_lambda_.1} parent=11 // pred_region
          _
        $region72: #{_lambda_.1} parent=11 // pred_fallthru
          _
        // Predicated region
        $region73: #{_lambda_.1} parent=11 // pred_check
          %p471 = pneg %p385
        $region74: #{_lambda_.1} parent=11 // pred_check_branch
          %473 = sbr.rel (%p471) target = $region76
        $region75: #{_lambda_.1} parent=11 // pred_region
          _
        $region76: #{_lambda_.1} parent=11 // pred_fallthru
          _
      $region12: #{_lambda_.1} parent=5 // pred_fallthru
        _
      %p474 = scmp.lt.s32.totalorder %s23, 2
      // Predicated region
      $region77: #{_lambda_.1} parent=5 // pred_check
        %p475 = pneg %p474
      $region78: #{_lambda_.1} parent=5 // pred_check_branch
        %477 = sbr.rel (%p475) target = $region80
      $region79: #{_lambda_.1} parent=5 // pred_region
        // Predicated region
        $region81: #{_lambda_.1} parent=79 // pred_check
          %p478 = pneg %p43
        $region82: #{_lambda_.1} parent=79 // pred_check_branch
          %480 = sbr.rel (%p478) target = $region84
        $region83: #{_lambda_.1} parent=79 // pred_region
          %s481 = sand.u32 %s33, 1
          %s482 = sand.u32 %s33, 1
          %s483 = smul.addr %s482, 16
          %s484 = scalar_lea.vmem [#allocation2], %s483
          %s485 = smul.u32 2, %s23
          %s486 = smul.addr %s485, 4
          %s487 = scalar_lea.vmem %s0, %s486
          // Predicated region
          $region85: #{_lambda_.1} parent=83 // pred_check
            _
          $region86: #{_lambda_.1} parent=83 // pred_check_branch
            %489 = sbr.rel (0) target = $region88
          $region87: #{_lambda_.1} parent=83 // pred_region
            // Predicated region
            $region89: #{_lambda_.1} parent=87 // pred_check
              _
            $region90: #{_lambda_.1} parent=87 // pred_check_branch
              %491 = sbr.rel (0) target = $region92
            $region91: #{_lambda_.1} parent=87 // pred_region
              // Predicated region
              $region104: #{_lambda_.1} parent=91 // pred_check
                _
              $region105: #{_lambda_.1} parent=91 // pred_check_branch
                %509 = sbr.rel (0) target = $region107
              $region106: #{_lambda_.1} parent=91 // pred_region
                loop: start=0, step=1, limit=1
                $region108: #{_lambda_.1} parent=106 // loop_pre_header
                  _
                $region109: #{_lambda_.1} parent=106 // loop_header
                  %s511 = sphi 0, %s515
                  %p512 = scmp.ge.s32.totalorder %s511, 1
                  %s516 = sphi %s487, %s487
                  %s517 = sphi %s484, %s484
                $region110: #{_lambda_.1} parent=106 // loop_header_branch
                  %514 = sbr.rel (%p512) target = $region114
                $region111: #{_lambda_.1} parent=106 // loop_body
                  %v518 = vld [vmem:[%s516] sm:$0xff]
                  %519 = vst [vmem:[%s517] sm:$0xff] %v518
                  %v520 = vld [vmem:[%s516 + $0x10] sm:$0xff]
                  %521 = vst [vmem:[%s517 + $0x8] sm:$0xff] %v520
                $region112: #{_lambda_.1} parent=106 // loop_footer
                  %s515 = sadd.s32 1, %s511
                $region113: #{_lambda_.1} parent=106 // loop_footer_branch
                  %510 = sbr.rel target = $region109
                $region114: #{_lambda_.1} parent=106 // loop_exit
                  _
              $region107: #{_lambda_.1} parent=91 // pred_fallthru
                _
              // Predicated region
              $region115: #{_lambda_.1} parent=91 // pred_check
                _
              $region116: #{_lambda_.1} parent=91 // pred_check_branch
                %523 = sbr.rel target = $region118
              $region117: #{_lambda_.1} parent=91 // pred_region
                _
              $region118: #{_lambda_.1} parent=91 // pred_fallthru
                _
            $region92: #{_lambda_.1} parent=87 // pred_fallthru
              _
            // Predicated region
            $region93: #{_lambda_.1} parent=87 // pred_check
              _
            $region94: #{_lambda_.1} parent=87 // pred_check_branch
              %493 = sbr.rel target = $region96
            $region95: #{_lambda_.1} parent=87 // pred_region
              %s495 = ssub.s32 256, 1
              loop: start=0, step=1, limit=1
              $region97: #{_lambda_.1} parent=95 // loop_pre_header
                _
              $region98: #{_lambda_.1} parent=95 // loop_header
                %s497 = sphi 0, %s501
                %p498 = scmp.ge.s32.totalorder %s497, 1
                %s502 = sphi %s487, %s487
                %s503 = sphi %s484, %s484
              $region99: #{_lambda_.1} parent=95 // loop_header_branch
                %500 = sbr.rel (%p498) target = $region103
              $region100: #{_lambda_.1} parent=95 // loop_body
                %v504 = vld [vmem:[%s502] sm:%s495]
                %505 = vst [vmem:[%s503] sm:%s495] %v504
                %v506 = vld [vmem:[%s502 + $0x10] sm:%s495]
                %507 = vst [vmem:[%s503 + $0x8] sm:%s495] %v506
              $region101: #{_lambda_.1} parent=95 // loop_footer
                %s501 = sadd.s32 1, %s497
              $region102: #{_lambda_.1} parent=95 // loop_footer_branch
                %496 = sbr.rel target = $region98
              $region103: #{_lambda_.1} parent=95 // loop_exit
                _
            $region96: #{_lambda_.1} parent=87 // pred_fallthru
              _
          $region88: #{_lambda_.1} parent=83 // pred_fallthru
            _
          %524 = vnop
        $region84: #{_lambda_.1} parent=79 // pred_fallthru
          _
      $region80: #{_lambda_.1} parent=5 // pred_fallthru
        _
      %p525 = scmp.le.s32.totalorder 1, %s23
      %p526 = scmp.lt.s32.totalorder %s23, 3
      %p527 = pnand %p525, %p526
      %p528 = pneg %p527
      // Predicated region
      $region119: #{_lambda_.1} parent=5 // pred_check
        _
      $region120: #{_lambda_.1} parent=5 // pred_check_branch
        %530 = sbr.rel (%p527) target = $region122
      $region121: #{_lambda_.1} parent=5 // pred_region
        %s531 = ssub.s32 %s23, 1
        %s532 = sand.u32 %s36, 1
        %s533 = sand.u32 %s36, 1
        %s534 = smul.addr %s533, 16
        %s535 = scalar_lea.vmem [#allocation2], %s534
        // Predicated region
        $region123: #{_lambda_.1} parent=121 // pred_check
          %p536 = pneg %p49
        $region124: #{_lambda_.1} parent=121 // pred_check_branch
          %538 = sbr.rel (%p536) target = $region126
        $region125: #{_lambda_.1} parent=121 // pred_region
          _
        $region126: #{_lambda_.1} parent=121 // pred_fallthru
          _
        %s539 = sand.u32 %s36, 1
        %s540 = sand.u32 %s36, 1
        %s541 = smul.addr %s540, 16
        %s542 = scalar_lea.vmem [#allocation2], %s541
        %p543 = pneg %p49
        %p544 = pneg %p46
        %p545 = pneg %p70
        %p546 = pneg %p67
        %p547 = pneg %p91
        %p548 = pneg %p88
        %p549 = pneg %p112
        %p550 = pneg %p109
        %p551 = pneg %p133
        %p552 = pneg %p130
        %p553 = pneg %p154
        %p554 = pneg %p151
        %p555 = pneg %p175
        %p556 = pneg %p172
        %p557 = pneg %p196
        %p558 = pneg %p193
        %p559 = pneg %p217
        %p560 = pneg %p214
        %p561 = pneg %p238
        %p562 = pneg %p235
        %p563 = pneg %p259
        %p564 = pneg %p256
        %p565 = pneg %p280
        %p566 = pneg %p277
        %p567 = pneg %p301
        %p568 = pneg %p298
        %p569 = pneg %p322
        %p570 = pneg %p319
        %p571 = pneg %p343
        %p572 = pneg %p340
        %p573 = pneg %p364
        %p574 = pneg %p361
        %p575 = pneg %p385
        %p576 = pneg %p382
        %p577 = pneg %p411
        %p578 = pneg %p408
        %s579 = sand.u32 %s398, 1
        %s580 = sand.u32 %s398, 1
        %s581 = smul.addr %s580, 32
        %s582 = scalar_lea.vmem [#allocation3], %s581
        %s583 = smul.u32 2, %s28
        %s584 = smul.u32 2, %s28
        %v586 = vld [vmem:[%s535] sm:$0xff]
        %v587 = vld [vmem:[%s535 + $0x8] sm:$0xff]
        %v588 = vld [vmem:[%s2] sm:$0xf]
        %v589 = vld [vmem:[%s3] sm:$0xff]
        %591 = vset.pattern.permute.xlu0 0
        %592 = vperm.xlu0 %591, %v589
        %v593 = vpop.permute.xlu0 %592
        %v597 = vunpack.c.l.b16 %v586
        %v598 = vunpack.c.h.b16 %v586
        %v599 = vunpack.c.l.b16 %v587
        %v600 = vunpack.c.h.b16 %v587
        %v601 = vpack.c.b16 %v599, %v597
        %v602 = vpack.c.b16 %v600, %v598
        %vm605 = vcmask 130048
        %v607 = vsel %vm605, %v588, 0
        %609 = vmatprep.subr.bf16.mxu0 0
        %610 = vmatpush1.bf16.msra.mxu0 0
        %611 = vmatprep.subr.bf16.mxu0 0
        %612 = vmatpush1.bf16.msra.mxu0 0
        %613 = vmatprep.subr.bf16.mxu0 0
        %614 = vmatpush1.bf16.msra.mxu0 0
        %615 = vmatprep.subr.bf16.mxu0 0
        %616 = vmatpush1.bf16.msra.mxu0 0
        %617 = vmatprep.subr.bf16.mxu0 0
        %618 = vmatpush1.bf16.msra.mxu0 0
        %619 = vmatprep.subr.bf16.mxu0 0
        %620 = vmatpush1.bf16.msra.mxu0 0
        %621 = vmatprep.subr.bf16.mxu0 0
        %622 = vmatpush1.bf16.msra.mxu0 0
        %623 = vmatprep.subr.bf16.mxu0 %v602
        %624 = vmatpush1.bf16.msra.mxu0 %v601
        %625 = vmatprep.subr.bf16.mxu0 0
        %626 = vmatpush2.bf16.msra.mxu0 0
        %627 = vmatprep.subr.bf16.mxu0 0
        %628 = vmatpush2.bf16.msra.mxu0 0
        %629 = vmatprep.subr.bf16.mxu0 0
        %630 = vmatpush2.bf16.msra.mxu0 0
        %631 = vmatprep.subr.bf16.mxu0 0
        %632 = vmatpush2.bf16.msra.mxu0 0
        %633 = vmatprep.subr.bf16.mxu0 0
        %634 = vmatpush2.bf16.msra.mxu0 0
        %635 = vmatprep.subr.bf16.mxu0 0
        %636 = vmatpush2.bf16.msra.mxu0 0
        %637 = vmatprep.subr.bf16.mxu0 0
        %638 = vmatpush2.bf16.msra.mxu0 0
        %639 = vmatprep.subr.bf16.mxu0 0
        %640 = vmatpush2.bf16.msra.mxu0 0
        %641 = vmatprep.mubr.bf16.mxu0 0
        %642 = vmatmul.mubr.bf16.gmra.mxu0 %v607
        %v643 = vpop.f32.mrf.mxu0
        %v644 = vadd.f32 %v593, %v643
        %v645 = vpop.f32.mrf.mxu0
        %v646 = vadd.f32 %v593, %v645
        %v647 = vpop.f32.mrf.mxu0
        %v648 = vpop.f32.mrf.mxu0
        %649 = vdwg.mxu0
        %v650 = vxor.u32 %v644, 2147483648
        %v651 = vxor.u32 %v646, 2147483648
        %v652 = vmul.f32 %v650, 1.442695
        %v653 = vpow.pop %v652
        %v654 = vmul.f32 %v651, 1.442695
        %v655 = vpow.pop %v654
        %v656 = vadd.f32 %v653, 1.0
        %v657 = vadd.f32 %v655, 1.0
        %v658 = vrcp.pop %v656
        %v659 = vmul.f32 1.0, %v658
        %v660 = vrcp.pop %v657
        %v661 = vmul.f32 1.0, %v660
        %v662 = vmul.f32 %v644, %v659
        %v663 = vmul.f32 %v646, %v661
        %v664 = vld [vmem:[%s4] sm:$0xf]
        %v665 = vld [vmem:[%s5] sm:$0xff]
        %667 = vset.pattern.permute.xlu0 0
        %668 = vperm.xlu0 %667, %v665
        %v669 = vpop.permute.xlu0 %668
        %v672 = vsel %vm605, %v664, 0
        %674 = vmatprep.subr.bf16.mxu0 0
        %675 = vmatpush1.bf16.msra.mxu0 0
        %676 = vmatprep.subr.bf16.mxu0 0
        %677 = vmatpush1.bf16.msra.mxu0 0
        %678 = vmatprep.subr.bf16.mxu0 0
        %679 = vmatpush1.bf16.msra.mxu0 0
        %680 = vmatprep.subr.bf16.mxu0 0
        %681 = vmatpush1.bf16.msra.mxu0 0
        %682 = vmatprep.subr.bf16.mxu0 0
        %683 = vmatpush1.bf16.msra.mxu0 0
        %684 = vmatprep.subr.bf16.mxu0 0
        %685 = vmatpush1.bf16.msra.mxu0 0
        %686 = vmatprep.subr.bf16.mxu0 0
        %687 = vmatpush1.bf16.msra.mxu0 0
        %688 = vmatprep.subr.bf16.mxu0 %v602
        %689 = vmatpush1.bf16.msra.mxu0 %v601
        %690 = vmatprep.subr.bf16.mxu0 0
        %691 = vmatpush2.bf16.msra.mxu0 0
        %692 = vmatprep.subr.bf16.mxu0 0
        %693 = vmatpush2.bf16.msra.mxu0 0
        %694 = vmatprep.subr.bf16.mxu0 0
        %695 = vmatpush2.bf16.msra.mxu0 0
        %696 = vmatprep.subr.bf16.mxu0 0
        %697 = vmatpush2.bf16.msra.mxu0 0
        %698 = vmatprep.subr.bf16.mxu0 0
        %699 = vmatpush2.bf16.msra.mxu0 0
        %700 = vmatprep.subr.bf16.mxu0 0
        %701 = vmatpush2.bf16.msra.mxu0 0
        %702 = vmatprep.subr.bf16.mxu0 0
        %703 = vmatpush2.bf16.msra.mxu0 0
        %704 = vmatprep.subr.bf16.mxu0 0
        %705 = vmatpush2.bf16.msra.mxu0 0
        %706 = vmatprep.mubr.bf16.mxu0 0
        %707 = vmatmul.mubr.bf16.gmra.mxu0 %v672
        %v708 = vpop.f32.mrf.mxu0
        %v709 = vadd.f32 %v669, %v708
        %v710 = vpop.f32.mrf.mxu0
        %v711 = vadd.f32 %v669, %v710
        %v712 = vpop.f32.mrf.mxu0
        %v713 = vpop.f32.mrf.mxu0
        %714 = vdwg.mxu0
        %v715 = vxor.u32 %v709, 2147483648
        %v716 = vxor.u32 %v711, 2147483648
        %v717 = vmul.f32 %v715, 1.442695
        %v718 = vpow.pop %v717
        %v719 = vmul.f32 %v716, 1.442695
        %v720 = vpow.pop %v719
        %v721 = vadd.f32 %v718, 1.0
        %v722 = vadd.f32 %v720, 1.0
        %v723 = vrcp.pop %v721
        %v724 = vmul.f32 1.0, %v723
        %v725 = vrcp.pop %v722
        %v726 = vmul.f32 1.0, %v725
        %v727 = vmul.f32 %v709, %v724
        %v728 = vmul.f32 %v711, %v726
        %v729 = vpack.c.bf16 %v662, %v662
        %v730 = vpack.c.bf16 %v663, %v663
        %v731 = vld [vmem:[%s6] sm:$0xf]
        %v732 = vld [vmem:[%s7] sm:$0xff]
        %734 = vset.pattern.permute.xlu0 0
        %735 = vperm.xlu0 %734, %v732
        %v736 = vpop.permute.xlu0 %735
        %vm738 = vcmask 64512
        %v740 = vsel %vm738, %v731, 0
        %vm742 = vcmask 1043456
        %v744 = vsel %vm742, %v729, 0
        %v747 = vsel %vm742, %v730, 0
        %749 = vmatprep.subr.bf16.mxu0 0
        %750 = vmatpush1.bf16.msra.mxu0 0
        %751 = vmatprep.subr.bf16.mxu0 0
        %752 = vmatpush1.bf16.msra.mxu0 0
        %753 = vmatprep.subr.bf16.mxu0 0
        %754 = vmatpush1.bf16.msra.mxu0 0
        %755 = vmatprep.subr.bf16.mxu0 0
        %756 = vmatpush1.bf16.msra.mxu0 0
        %757 = vmatprep.subr.bf16.mxu0 0
        %758 = vmatpush1.bf16.msra.mxu0 0
        %759 = vmatprep.subr.bf16.mxu0 0
        %760 = vmatpush1.bf16.msra.mxu0 0
        %761 = vmatprep.subr.bf16.mxu0 0
        %762 = vmatpush1.bf16.msra.mxu0 0
        %763 = vmatprep.subr.bf16.mxu0 %v747
        %764 = vmatpush1.bf16.msra.mxu0 %v744
        %765 = vmatprep.subr.bf16.mxu0 0
        %766 = vmatpush2.bf16.msra.mxu0 0
        %767 = vmatprep.subr.bf16.mxu0 0
        %768 = vmatpush2.bf16.msra.mxu0 0
        %769 = vmatprep.subr.bf16.mxu0 0
        %770 = vmatpush2.bf16.msra.mxu0 0
        %771 = vmatprep.subr.bf16.mxu0 0
        %772 = vmatpush2.bf16.msra.mxu0 0
        %773 = vmatprep.subr.bf16.mxu0 0
        %774 = vmatpush2.bf16.msra.mxu0 0
        %775 = vmatprep.subr.bf16.mxu0 0
        %776 = vmatpush2.bf16.msra.mxu0 0
        %777 = vmatprep.subr.bf16.mxu0 0
        %778 = vmatpush2.bf16.msra.mxu0 0
        %779 = vmatprep.subr.bf16.mxu0 0
        %780 = vmatpush2.bf16.msra.mxu0 0
        %781 = vmatprep.mubr.bf16.mxu0 0
        %782 = vmatmul.mubr.bf16.gmra.mxu0 %v740
        %v783 = vpop.f32.mrf.mxu0
        %v784 = vadd.f32 %v736, %v783
        %v785 = vpop.f32.mrf.mxu0
        %v786 = vadd.f32 %v736, %v785
        %v787 = vpop.f32.mrf.mxu0
        %v788 = vpop.f32.mrf.mxu0
        %789 = vdwg.mxu0
        %v790 = vxor.u32 %v784, 2147483648
        %v791 = vxor.u32 %v786, 2147483648
        %v792 = vmul.f32 %v790, 1.442695
        %v793 = vpow.pop %v792
        %v794 = vmul.f32 %v791, 1.442695
        %v795 = vpow.pop %v794
        %v796 = vadd.f32 %v793, 1.0
        %v797 = vadd.f32 %v795, 1.0
        %v798 = vrcp.pop %v796
        %v799 = vmul.f32 1.0, %v798
        %v800 = vrcp.pop %v797
        %v801 = vmul.f32 1.0, %v800
        %v802 = vmul.f32 %v784, %v799
        %v803 = vmul.f32 %v786, %v801
        %804 = vrot.lane.b32.xlu0 %v802, 17
        %v805 = vpop.permute.xlu0 %804
        %806 = vrot.lane.b32.xlu0 %v803, 17
        %v807 = vpop.permute.xlu0 %806
        %v808 = vlaneseq
        %v809 = vand.u32 %v808, 127
        %vm810 = vcmp.lt.s32.totalorder %v809, 17
        %v811 = vsel %vm810, %v805, %v807
        %v812 = vsel %vm810, %v807, %v805
        %v813 = vld [vmem:[%s1] sm:$0x3]
        %v815 = vlaneseq
        %v816 = vshrl.u32 %v815, 7
        %v817 = vsub.s32 0, %v816
        %v818 = vrot.slane %v813, %v817
        %v819 = vlaneseq
        %v820 = vshrl.u32 %v819, 7
        %v821 = vsub.s32 1, %v820
        %v822 = vrot.slane %v813, %v821
        %v825 = vmul.f32 %v812, %v818
        %v826 = vmul.f32 %v811, %v822
        %v827 = vld [vmem:[%s8] sm:$0xf]
        %v828 = vpack.c.bf16 %v825, %v825
        %v829 = vpack.c.bf16 %v826, %v826
        %830 = vrot.lane.b32.xlu0 %v802, 16
        %v831 = vpop.permute.xlu0 %830
        %832 = vrot.lane.b32.xlu0 %v803, 16
        %v833 = vpop.permute.xlu0 %832
        %vm834 = vcmp.lt.s32.totalorder %v809, 16
        %v835 = vsel %vm834, %v831, %v833
        %v836 = vsel %vm834, %v833, %v831
        %s837 = scalar_lea.vmem %s1, 2
        %v838 = vld [vmem:[%s837] sm:$0x3]
        %v840 = vlaneseq
        %v841 = vshrl.u32 %v840, 7
        %v842 = vsub.s32 0, %v841
        %v843 = vrot.slane %v838, %v842
        %v844 = vlaneseq
        %v845 = vshrl.u32 %v844, 7
        %v846 = vsub.s32 1, %v845
        %v847 = vrot.slane %v838, %v846
        %v850 = vmul.f32 %v836, %v843
        %v851 = vmul.f32 %v835, %v847
        %s852 = scalar_lea.vmem %s8, 4
        %v853 = vld [vmem:[%s852] sm:$0xf]
        %v854 = vpack.c.bf16 %v850, %v850
        %v855 = vpack.c.bf16 %v851, %v851
        %v857 = vsel %vm738, %v853, 0
        %v860 = vsel %vm742, %v854, 0
        %v863 = vsel %vm742, %v855, 0
        %865 = vmatprep.subr.bf16.mxu0 0
        %866 = vmatpush1.bf16.msra.mxu0 0
        %867 = vmatprep.subr.bf16.mxu0 0
        %868 = vmatpush1.bf16.msra.mxu0 0
        %869 = vmatprep.subr.bf16.mxu0 0
        %870 = vmatpush1.bf16.msra.mxu0 0
        %871 = vmatprep.subr.bf16.mxu0 0
        %872 = vmatpush1.bf16.msra.mxu0 0
        %873 = vmatprep.subr.bf16.mxu0 0
        %874 = vmatpush1.bf16.msra.mxu0 0
        %875 = vmatprep.subr.bf16.mxu0 0
        %876 = vmatpush1.bf16.msra.mxu0 0
        %877 = vmatprep.subr.bf16.mxu0 0
        %878 = vmatpush1.bf16.msra.mxu0 0
        %879 = vmatprep.subr.bf16.mxu0 %v863
        %880 = vmatpush1.bf16.msra.mxu0 %v860
        %881 = vmatprep.subr.bf16.mxu0 0
        %882 = vmatpush2.bf16.msra.mxu0 0
        %883 = vmatprep.subr.bf16.mxu0 0
        %884 = vmatpush2.bf16.msra.mxu0 0
        %885 = vmatprep.subr.bf16.mxu0 0
        %886 = vmatpush2.bf16.msra.mxu0 0
        %887 = vmatprep.subr.bf16.mxu0 0
        %888 = vmatpush2.bf16.msra.mxu0 0
        %889 = vmatprep.subr.bf16.mxu0 0
        %890 = vmatpush2.bf16.msra.mxu0 0
        %891 = vmatprep.subr.bf16.mxu0 0
        %892 = vmatpush2.bf16.msra.mxu0 0
        %893 = vmatprep.subr.bf16.mxu0 0
        %894 = vmatpush2.bf16.msra.mxu0 0
        %895 = vmatprep.subr.bf16.mxu0 0
        %896 = vmatpush2.bf16.msra.mxu0 0
        %897 = vmatprep.mubr.bf16.mxu0 0
        %898 = vmatmul.mubr.bf16.gmra.mxu0 %v857
        %v899 = vpop.f32.mrf.mxu0
        %v900 = vadd.f32 0.0, %v899
        %v901 = vpop.f32.mrf.mxu0
        %v902 = vadd.f32 0.0, %v901
        %v903 = vpop.f32.mrf.mxu0
        %v904 = vpop.f32.mrf.mxu0
        %905 = vdwg.mxu0
        %v907 = vsel %vm738, %v827, 0
        %v910 = vsel %vm742, %v828, 0
        %v913 = vsel %vm742, %v829, 0
        %915 = vmatprep.subr.bf16.mxu0 0
        %916 = vmatpush1.bf16.msra.mxu0 0
        %917 = vmatprep.subr.bf16.mxu0 0
        %918 = vmatpush1.bf16.msra.mxu0 0
        %919 = vmatprep.subr.bf16.mxu0 0
        %920 = vmatpush1.bf16.msra.mxu0 0
        %921 = vmatprep.subr.bf16.mxu0 0
        %922 = vmatpush1.bf16.msra.mxu0 0
        %923 = vmatprep.subr.bf16.mxu0 0
        %924 = vmatpush1.bf16.msra.mxu0 0
        %925 = vmatprep.subr.bf16.mxu0 0
        %926 = vmatpush1.bf16.msra.mxu0 0
        %927 = vmatprep.subr.bf16.mxu0 0
        %928 = vmatpush1.bf16.msra.mxu0 0
        %929 = vmatprep.subr.bf16.mxu0 %v913
        %930 = vmatpush1.bf16.msra.mxu0 %v910
        %931 = vmatprep.subr.bf16.mxu0 0
        %932 = vmatpush2.bf16.msra.mxu0 0
        %933 = vmatprep.subr.bf16.mxu0 0
        %934 = vmatpush2.bf16.msra.mxu0 0
        %935 = vmatprep.subr.bf16.mxu0 0
        %936 = vmatpush2.bf16.msra.mxu0 0
        %937 = vmatprep.subr.bf16.mxu0 0
        %938 = vmatpush2.bf16.msra.mxu0 0
        %939 = vmatprep.subr.bf16.mxu0 0
        %940 = vmatpush2.bf16.msra.mxu0 0
        %941 = vmatprep.subr.bf16.mxu0 0
        %942 = vmatpush2.bf16.msra.mxu0 0
        %943 = vmatprep.subr.bf16.mxu0 0
        %944 = vmatpush2.bf16.msra.mxu0 0
        %945 = vmatprep.subr.bf16.mxu0 0
        %946 = vmatpush2.bf16.msra.mxu0 0
        %947 = vmatprep.mubr.bf16.mxu0 0
        %948 = vmatmul.mubr.bf16.gmra.mxu0 %v907
        %v949 = vpop.f32.mrf.mxu0
        %v950 = vadd.f32 %v900, %v949
        %v951 = vpop.f32.mrf.mxu0
        %v952 = vadd.f32 %v902, %v951
        %v953 = vpop.f32.mrf.mxu0
        %v954 = vpop.f32.mrf.mxu0
        %955 = vdwg.mxu0
        %956 = vrot.lane.b32.xlu0 %v802, 15
        %v957 = vpop.permute.xlu0 %956
        %958 = vrot.lane.b32.xlu0 %v803, 15
        %v959 = vpop.permute.xlu0 %958
        %vm960 = vcmp.lt.s32.totalorder %v809, 15
        %v961 = vsel %vm960, %v957, %v959
        %v962 = vsel %vm960, %v959, %v957
        %s963 = scalar_lea.vmem %s1, 4
        %v964 = vld [vmem:[%s963] sm:$0x3]
        %v966 = vlaneseq
        %v967 = vshrl.u32 %v966, 7
        %v968 = vsub.s32 0, %v967
        %v969 = vrot.slane %v964, %v968
        %v970 = vlaneseq
        %v971 = vshrl.u32 %v970, 7
        %v972 = vsub.s32 1, %v971
        %v973 = vrot.slane %v964, %v972
        %v976 = vmul.f32 %v962, %v969
        %v977 = vmul.f32 %v961, %v973
        %s978 = scalar_lea.vmem %s8, 8
        %v979 = vld [vmem:[%s978] sm:$0xf]
        %v980 = vpack.c.bf16 %v976, %v976
        %v981 = vpack.c.bf16 %v977, %v977
        %v983 = vsel %vm738, %v979, 0
        %v986 = vsel %vm742, %v980, 0
        %v989 = vsel %vm742, %v981, 0
        %991 = vmatprep.subr.bf16.mxu0 0
        %992 = vmatpush1.bf16.msra.mxu0 0
        %993 = vmatprep.subr.bf16.mxu0 0
        %994 = vmatpush1.bf16.msra.mxu0 0
        %995 = vmatprep.subr.bf16.mxu0 0
        %996 = vmatpush1.bf16.msra.mxu0 0
        %997 = vmatprep.subr.bf16.mxu0 0
        %998 = vmatpush1.bf16.msra.mxu0 0
        %999 = vmatprep.subr.bf16.mxu0 0
        %1000 = vmatpush1.bf16.msra.mxu0 0
        %1001 = vmatprep.subr.bf16.mxu0 0
        %1002 = vmatpush1.bf16.msra.mxu0 0
        %1003 = vmatprep.subr.bf16.mxu0 0
        %1004 = vmatpush1.bf16.msra.mxu0 0
        %1005 = vmatprep.subr.bf16.mxu0 %v989
        %1006 = vmatpush1.bf16.msra.mxu0 %v986
        %1007 = vmatprep.subr.bf16.mxu0 0
        %1008 = vmatpush2.bf16.msra.mxu0 0
        %1009 = vmatprep.subr.bf16.mxu0 0
        %1010 = vmatpush2.bf16.msra.mxu0 0
        %1011 = vmatprep.subr.bf16.mxu0 0
        %1012 = vmatpush2.bf16.msra.mxu0 0
        %1013 = vmatprep.subr.bf16.mxu0 0
        %1014 = vmatpush2.bf16.msra.mxu0 0
        %1015 = vmatprep.subr.bf16.mxu0 0
        %1016 = vmatpush2.bf16.msra.mxu0 0
        %1017 = vmatprep.subr.bf16.mxu0 0
        %1018 = vmatpush2.bf16.msra.mxu0 0
        %1019 = vmatprep.subr.bf16.mxu0 0
        %1020 = vmatpush2.bf16.msra.mxu0 0
        %1021 = vmatprep.subr.bf16.mxu0 0
        %1022 = vmatpush2.bf16.msra.mxu0 0
        %1023 = vmatprep.mubr.bf16.mxu0 0
        %1024 = vmatmul.mubr.bf16.gmra.mxu0 %v983
        %v1025 = vpop.f32.mrf.mxu0
        %v1026 = vadd.f32 0.0, %v1025
        %v1027 = vpop.f32.mrf.mxu0
        %v1028 = vadd.f32 0.0, %v1027
        %v1029 = vpop.f32.mrf.mxu0
        %v1030 = vpop.f32.mrf.mxu0
        %1031 = vdwg.mxu0
        %v1032 = vadd.f32 %v950, %v1026
        %v1033 = vadd.f32 %v952, %v1028
        %1034 = vrot.lane.b32.xlu0 %v802, 1
        %v1035 = vpop.permute.xlu0 %1034
        %1036 = vrot.lane.b32.xlu0 %v803, 1
        %v1037 = vpop.permute.xlu0 %1036
        %vm1038 = vcmp.lt.s32.totalorder %v809, 1
        %v1039 = vsel %vm1038, %v1035, %v1037
        %v1040 = vsel %vm1038, %v1037, %v1035
        %s1041 = scalar_lea.vmem %s1, 6
        %v1042 = vld [vmem:[%s1041] sm:$0x3]
        %v1044 = vlaneseq
        %v1045 = vshrl.u32 %v1044, 7
        %v1046 = vsub.s32 0, %v1045
        %v1047 = vrot.slane %v1042, %v1046
        %v1048 = vlaneseq
        %v1049 = vshrl.u32 %v1048, 7
        %v1050 = vsub.s32 1, %v1049
        %v1051 = vrot.slane %v1042, %v1050
        %v1054 = vmul.f32 %v1040, %v1047
        %v1055 = vmul.f32 %v1039, %v1051
        %s1056 = scalar_lea.vmem %s8, 12
        %v1057 = vld [vmem:[%s1056] sm:$0xf]
        %v1058 = vpack.c.bf16 %v1054, %v1054
        %v1059 = vpack.c.bf16 %v1055, %v1055
        %v1061 = vsel %vm738, %v1057, 0
        %v1064 = vsel %vm742, %v1058, 0
        %v1067 = vsel %vm742, %v1059, 0
        %1069 = vmatprep.subr.bf16.mxu0 0
        %1070 = vmatpush1.bf16.msra.mxu0 0
        %1071 = vmatprep.subr.bf16.mxu0 0
        %1072 = vmatpush1.bf16.msra.mxu0 0
        %1073 = vmatprep.subr.bf16.mxu0 0
        %1074 = vmatpush1.bf16.msra.mxu0 0
        %1075 = vmatprep.subr.bf16.mxu0 0
        %1076 = vmatpush1.bf16.msra.mxu0 0
        %1077 = vmatprep.subr.bf16.mxu0 0
        %1078 = vmatpush1.bf16.msra.mxu0 0
        %1079 = vmatprep.subr.bf16.mxu0 0
        %1080 = vmatpush1.bf16.msra.mxu0 0
        %1081 = vmatprep.subr.bf16.mxu0 0
        %1082 = vmatpush1.bf16.msra.mxu0 0
        %1083 = vmatprep.subr.bf16.mxu0 %v1067
        %1084 = vmatpush1.bf16.msra.mxu0 %v1064
        %1085 = vmatprep.subr.bf16.mxu0 0
        %1086 = vmatpush2.bf16.msra.mxu0 0
        %1087 = vmatprep.subr.bf16.mxu0 0
        %1088 = vmatpush2.bf16.msra.mxu0 0
        %1089 = vmatprep.subr.bf16.mxu0 0
        %1090 = vmatpush2.bf16.msra.mxu0 0
        %1091 = vmatprep.subr.bf16.mxu0 0
        %1092 = vmatpush2.bf16.msra.mxu0 0
        %1093 = vmatprep.subr.bf16.mxu0 0
        %1094 = vmatpush2.bf16.msra.mxu0 0
        %1095 = vmatprep.subr.bf16.mxu0 0
        %1096 = vmatpush2.bf16.msra.mxu0 0
        %1097 = vmatprep.subr.bf16.mxu0 0
        %1098 = vmatpush2.bf16.msra.mxu0 0
        %1099 = vmatprep.subr.bf16.mxu0 0
        %1100 = vmatpush2.bf16.msra.mxu0 0
        %1101 = vmatprep.mubr.bf16.mxu0 0
        %1102 = vmatmul.mubr.bf16.gmra.mxu0 %v1061
        %v1103 = vpop.f32.mrf.mxu0
        %v1104 = vadd.f32 0.0, %v1103
        %v1105 = vpop.f32.mrf.mxu0
        %v1106 = vadd.f32 0.0, %v1105
        %v1107 = vpop.f32.mrf.mxu0
        %v1108 = vpop.f32.mrf.mxu0
        %1109 = vdwg.mxu0
        %v1110 = vadd.f32 %v1032, %v1104
        %v1111 = vadd.f32 %v1033, %v1106
        %s1112 = scalar_lea.vmem %s8, 16
        %v1113 = vld [vmem:[%s1112] sm:$0xf]
        %v1114 = vpack.c.bf16 %v802, %v802
        %v1115 = vpack.c.bf16 %v803, %v803
        %v1117 = vsel %vm738, %v1113, 0
        %v1120 = vsel %vm742, %v1114, 0
        %v1123 = vsel %vm742, %v1115, 0
        %1125 = vmatprep.subr.bf16.mxu0 0
        %1126 = vmatpush1.bf16.msra.mxu0 0
        %1127 = vmatprep.subr.bf16.mxu0 0
        %1128 = vmatpush1.bf16.msra.mxu0 0
        %1129 = vmatprep.subr.bf16.mxu0 0
        %1130 = vmatpush1.bf16.msra.mxu0 0
        %1131 = vmatprep.subr.bf16.mxu0 0
        %1132 = vmatpush1.bf16.msra.mxu0 0
        %1133 = vmatprep.subr.bf16.mxu0 0
        %1134 = vmatpush1.bf16.msra.mxu0 0
        %1135 = vmatprep.subr.bf16.mxu0 0
        %1136 = vmatpush1.bf16.msra.mxu0 0
        %1137 = vmatprep.subr.bf16.mxu0 0
        %1138 = vmatpush1.bf16.msra.mxu0 0
        %1139 = vmatprep.subr.bf16.mxu0 %v1123
        %1140 = vmatpush1.bf16.msra.mxu0 %v1120
        %1141 = vmatprep.subr.bf16.mxu0 0
        %1142 = vmatpush2.bf16.msra.mxu0 0
        %1143 = vmatprep.subr.bf16.mxu0 0
        %1144 = vmatpush2.bf16.msra.mxu0 0
        %1145 = vmatprep.subr.bf16.mxu0 0
        %1146 = vmatpush2.bf16.msra.mxu0 0
        %1147 = vmatprep.subr.bf16.mxu0 0
        %1148 = vmatpush2.bf16.msra.mxu0 0
        %1149 = vmatprep.subr.bf16.mxu0 0
        %1150 = vmatpush2.bf16.msra.mxu0 0
        %1151 = vmatprep.subr.bf16.mxu0 0
        %1152 = vmatpush2.bf16.msra.mxu0 0
        %1153 = vmatprep.subr.bf16.mxu0 0
        %1154 = vmatpush2.bf16.msra.mxu0 0
        %1155 = vmatprep.subr.bf16.mxu0 0
        %1156 = vmatpush2.bf16.msra.mxu0 0
        %1157 = vmatprep.mubr.bf16.mxu0 0
        %1158 = vmatmul.mubr.bf16.gmra.mxu0 %v1117
        %v1159 = vpop.f32.mrf.mxu0
        %v1160 = vadd.f32 0.0, %v1159
        %v1161 = vpop.f32.mrf.mxu0
        %v1162 = vadd.f32 0.0, %v1161
        %v1163 = vpop.f32.mrf.mxu0
        %v1164 = vpop.f32.mrf.mxu0
        %1165 = vdwg.mxu0
        %v1166 = vadd.f32 %v1110, %v1160
        %v1167 = vadd.f32 %v1111, %v1162
        %1168 = vrot.lane.b32.xlu0 %v802, 127
        %v1169 = vpop.permute.xlu0 %1168
        %1170 = vrot.lane.b32.xlu0 %v803, 127
        %v1171 = vpop.permute.xlu0 %1170
        %vm1172 = vcmp.lt.s32.totalorder %v809, 127
        %v1173 = vsel %vm1172, %v1169, %v1171
        %v1174 = vsel %vm1172, %v1171, %v1169
        %s1175 = scalar_lea.vmem %s1, 10
        %v1176 = vld [vmem:[%s1175] sm:$0x3]
        %v1178 = vlaneseq
        %v1179 = vshrl.u32 %v1178, 7
        %v1180 = vsub.s32 0, %v1179
        %v1181 = vrot.slane %v1176, %v1180
        %v1182 = vlaneseq
        %v1183 = vshrl.u32 %v1182, 7
        %v1184 = vsub.s32 1, %v1183
        %v1185 = vrot.slane %v1176, %v1184
        %v1188 = vmul.f32 %v1173, %v1181
        %v1189 = vmul.f32 %v1174, %v1185
        %s1190 = scalar_lea.vmem %s8, 20
        %v1191 = vld [vmem:[%s1190] sm:$0xf]
        %v1192 = vpack.c.bf16 %v1188, %v1188
        %v1193 = vpack.c.bf16 %v1189, %v1189
        %v1195 = vsel %vm738, %v1191, 0
        %v1198 = vsel %vm742, %v1192, 0
        %v1201 = vsel %vm742, %v1193, 0
        %1203 = vmatprep.subr.bf16.mxu0 0
        %1204 = vmatpush1.bf16.msra.mxu0 0
        %1205 = vmatprep.subr.bf16.mxu0 0
        %1206 = vmatpush1.bf16.msra.mxu0 0
        %1207 = vmatprep.subr.bf16.mxu0 0
        %1208 = vmatpush1.bf16.msra.mxu0 0
        %1209 = vmatprep.subr.bf16.mxu0 0
        %1210 = vmatpush1.bf16.msra.mxu0 0
        %1211 = vmatprep.subr.bf16.mxu0 0
        %1212 = vmatpush1.bf16.msra.mxu0 0
        %1213 = vmatprep.subr.bf16.mxu0 0
        %1214 = vmatpush1.bf16.msra.mxu0 0
        %1215 = vmatprep.subr.bf16.mxu0 0
        %1216 = vmatpush1.bf16.msra.mxu0 0
        %1217 = vmatprep.subr.bf16.mxu0 %v1201
        %1218 = vmatpush1.bf16.msra.mxu0 %v1198
        %1219 = vmatprep.subr.bf16.mxu0 0
        %1220 = vmatpush2.bf16.msra.mxu0 0
        %1221 = vmatprep.subr.bf16.mxu0 0
        %1222 = vmatpush2.bf16.msra.mxu0 0
        %1223 = vmatprep.subr.bf16.mxu0 0
        %1224 = vmatpush2.bf16.msra.mxu0 0
        %1225 = vmatprep.subr.bf16.mxu0 0
        %1226 = vmatpush2.bf16.msra.mxu0 0
        %1227 = vmatprep.subr.bf16.mxu0 0
        %1228 = vmatpush2.bf16.msra.mxu0 0
        %1229 = vmatprep.subr.bf16.mxu0 0
        %1230 = vmatpush2.bf16.msra.mxu0 0
        %1231 = vmatprep.subr.bf16.mxu0 0
        %1232 = vmatpush2.bf16.msra.mxu0 0
        %1233 = vmatprep.subr.bf16.mxu0 0
        %1234 = vmatpush2.bf16.msra.mxu0 0
        %1235 = vmatprep.mubr.bf16.mxu0 0
        %1236 = vmatmul.mubr.bf16.gmra.mxu0 %v1195
        %v1237 = vpop.f32.mrf.mxu0
        %v1238 = vadd.f32 0.0, %v1237
        %v1239 = vpop.f32.mrf.mxu0
        %v1240 = vadd.f32 0.0, %v1239
        %v1241 = vpop.f32.mrf.mxu0
        %v1242 = vpop.f32.mrf.mxu0
        %1243 = vdwg.mxu0
        %v1244 = vadd.f32 %v1166, %v1238
        %v1245 = vadd.f32 %v1167, %v1240
        %1246 = vrot.lane.b32.xlu0 %v802, 113
        %v1247 = vpop.permute.xlu0 %1246
        %1248 = vrot.lane.b32.xlu0 %v803, 113
        %v1249 = vpop.permute.xlu0 %1248
        %vm1250 = vcmp.lt.s32.totalorder %v809, 113
        %v1251 = vsel %vm1250, %v1247, %v1249
        %v1252 = vsel %vm1250, %v1249, %v1247
        %s1253 = scalar_lea.vmem %s1, 12
        %v1254 = vld [vmem:[%s1253] sm:$0x3]
        %v1256 = vlaneseq
        %v1257 = vshrl.u32 %v1256, 7
        %v1258 = vsub.s32 0, %v1257
        %v1259 = vrot.slane %v1254, %v1258
        %v1260 = vlaneseq
        %v1261 = vshrl.u32 %v1260, 7
        %v1262 = vsub.s32 1, %v1261
        %v1263 = vrot.slane %v1254, %v1262
        %v1266 = vmul.f32 %v1251, %v1259
        %v1267 = vmul.f32 %v1252, %v1263
        %s1268 = scalar_lea.vmem %s8, 24
        %v1269 = vld [vmem:[%s1268] sm:$0xf]
        %v1270 = vpack.c.bf16 %v1266, %v1266
        %v1271 = vpack.c.bf16 %v1267, %v1267
        %v1273 = vsel %vm738, %v1269, 0
        %v1276 = vsel %vm742, %v1270, 0
        %v1279 = vsel %vm742, %v1271, 0
        %1281 = vmatprep.subr.bf16.mxu0 0
        %1282 = vmatpush1.bf16.msra.mxu0 0
        %1283 = vmatprep.subr.bf16.mxu0 0
        %1284 = vmatpush1.bf16.msra.mxu0 0
        %1285 = vmatprep.subr.bf16.mxu0 0
        %1286 = vmatpush1.bf16.msra.mxu0 0
        %1287 = vmatprep.subr.bf16.mxu0 0
        %1288 = vmatpush1.bf16.msra.mxu0 0
        %1289 = vmatprep.subr.bf16.mxu0 0
        %1290 = vmatpush1.bf16.msra.mxu0 0
        %1291 = vmatprep.subr.bf16.mxu0 0
        %1292 = vmatpush1.bf16.msra.mxu0 0
        %1293 = vmatprep.subr.bf16.mxu0 0
        %1294 = vmatpush1.bf16.msra.mxu0 0
        %1295 = vmatprep.subr.bf16.mxu0 %v1279
        %1296 = vmatpush1.bf16.msra.mxu0 %v1276
        %1297 = vmatprep.subr.bf16.mxu0 0
        %1298 = vmatpush2.bf16.msra.mxu0 0
        %1299 = vmatprep.subr.bf16.mxu0 0
        %1300 = vmatpush2.bf16.msra.mxu0 0
        %1301 = vmatprep.subr.bf16.mxu0 0
        %1302 = vmatpush2.bf16.msra.mxu0 0
        %1303 = vmatprep.subr.bf16.mxu0 0
        %1304 = vmatpush2.bf16.msra.mxu0 0
        %1305 = vmatprep.subr.bf16.mxu0 0
        %1306 = vmatpush2.bf16.msra.mxu0 0
        %1307 = vmatprep.subr.bf16.mxu0 0
        %1308 = vmatpush2.bf16.msra.mxu0 0
        %1309 = vmatprep.subr.bf16.mxu0 0
        %1310 = vmatpush2.bf16.msra.mxu0 0
        %1311 = vmatprep.subr.bf16.mxu0 0
        %1312 = vmatpush2.bf16.msra.mxu0 0
        %1313 = vmatprep.mubr.bf16.mxu0 0
        %1314 = vmatmul.mubr.bf16.gmra.mxu0 %v1273
        %v1315 = vpop.f32.mrf.mxu0
        %v1316 = vadd.f32 0.0, %v1315
        %v1317 = vpop.f32.mrf.mxu0
        %v1318 = vadd.f32 0.0, %v1317
        %v1319 = vpop.f32.mrf.mxu0
        %v1320 = vpop.f32.mrf.mxu0
        %1321 = vdwg.mxu0
        %v1322 = vadd.f32 %v1244, %v1316
        %v1323 = vadd.f32 %v1245, %v1318
        %1324 = vrot.lane.b32.xlu0 %v802, 112
        %v1325 = vpop.permute.xlu0 %1324
        %1326 = vrot.lane.b32.xlu0 %v803, 112
        %v1327 = vpop.permute.xlu0 %1326
        %vm1328 = vcmp.lt.s32.totalorder %v809, 112
        %v1329 = vsel %vm1328, %v1325, %v1327
        %v1330 = vsel %vm1328, %v1327, %v1325
        %s1331 = scalar_lea.vmem %s1, 14
        %v1332 = vld [vmem:[%s1331] sm:$0x3]
        %v1334 = vlaneseq
        %v1335 = vshrl.u32 %v1334, 7
        %v1336 = vsub.s32 0, %v1335
        %v1337 = vrot.slane %v1332, %v1336
        %v1338 = vlaneseq
        %v1339 = vshrl.u32 %v1338, 7
        %v1340 = vsub.s32 1, %v1339
        %v1341 = vrot.slane %v1332, %v1340
        %v1344 = vmul.f32 %v1329, %v1337
        %v1345 = vmul.f32 %v1330, %v1341
        %s1346 = scalar_lea.vmem %s8, 28
        %v1347 = vld [vmem:[%s1346] sm:$0xf]
        %v1348 = vpack.c.bf16 %v1344, %v1344
        %v1349 = vpack.c.bf16 %v1345, %v1345
        %v1351 = vsel %vm738, %v1347, 0
        %v1354 = vsel %vm742, %v1348, 0
        %v1357 = vsel %vm742, %v1349, 0
        %1359 = vmatprep.subr.bf16.mxu0 0
        %1360 = vmatpush1.bf16.msra.mxu0 0
        %1361 = vmatprep.subr.bf16.mxu0 0
        %1362 = vmatpush1.bf16.msra.mxu0 0
        %1363 = vmatprep.subr.bf16.mxu0 0
        %1364 = vmatpush1.bf16.msra.mxu0 0
        %1365 = vmatprep.subr.bf16.mxu0 0
        %1366 = vmatpush1.bf16.msra.mxu0 0
        %1367 = vmatprep.subr.bf16.mxu0 0
        %1368 = vmatpush1.bf16.msra.mxu0 0
        %1369 = vmatprep.subr.bf16.mxu0 0
        %1370 = vmatpush1.bf16.msra.mxu0 0
        %1371 = vmatprep.subr.bf16.mxu0 0
        %1372 = vmatpush1.bf16.msra.mxu0 0
        %1373 = vmatprep.subr.bf16.mxu0 %v1357
        %1374 = vmatpush1.bf16.msra.mxu0 %v1354
        %1375 = vmatprep.subr.bf16.mxu0 0
        %1376 = vmatpush2.bf16.msra.mxu0 0
        %1377 = vmatprep.subr.bf16.mxu0 0
        %1378 = vmatpush2.bf16.msra.mxu0 0
        %1379 = vmatprep.subr.bf16.mxu0 0
        %1380 = vmatpush2.bf16.msra.mxu0 0
        %1381 = vmatprep.subr.bf16.mxu0 0
        %1382 = vmatpush2.bf16.msra.mxu0 0
        %1383 = vmatprep.subr.bf16.mxu0 0
        %1384 = vmatpush2.bf16.msra.mxu0 0
        %1385 = vmatprep.subr.bf16.mxu0 0
        %1386 = vmatpush2.bf16.msra.mxu0 0
        %1387 = vmatprep.subr.bf16.mxu0 0
        %1388 = vmatpush2.bf16.msra.mxu0 0
        %1389 = vmatprep.subr.bf16.mxu0 0
        %1390 = vmatpush2.bf16.msra.mxu0 0
        %1391 = vmatprep.mubr.bf16.mxu0 0
        %1392 = vmatmul.mubr.bf16.gmra.mxu0 %v1351
        %v1393 = vpop.f32.mrf.mxu0
        %v1394 = vadd.f32 0.0, %v1393
        %v1395 = vpop.f32.mrf.mxu0
        %v1396 = vadd.f32 0.0, %v1395
        %v1397 = vpop.f32.mrf.mxu0
        %v1398 = vpop.f32.mrf.mxu0
        %1399 = vdwg.mxu0
        %v1400 = vadd.f32 %v1322, %v1394
        %v1401 = vadd.f32 %v1323, %v1396
        %1402 = vrot.lane.b32.xlu0 %v802, 111
        %v1403 = vpop.permute.xlu0 %1402
        %1404 = vrot.lane.b32.xlu0 %v803, 111
        %v1405 = vpop.permute.xlu0 %1404
        %vm1406 = vcmp.lt.s32.totalorder %v809, 111
        %v1407 = vsel %vm1406, %v1403, %v1405
        %v1408 = vsel %vm1406, %v1405, %v1403
        %s1409 = scalar_lea.vmem %s1, 16
        %v1410 = vld [vmem:[%s1409] sm:$0x3]
        %v1412 = vlaneseq
        %v1413 = vshrl.u32 %v1412, 7
        %v1414 = vsub.s32 0, %v1413
        %v1415 = vrot.slane %v1410, %v1414
        %v1416 = vlaneseq
        %v1417 = vshrl.u32 %v1416, 7
        %v1418 = vsub.s32 1, %v1417
        %v1419 = vrot.slane %v1410, %v1418
        %v1422 = vmul.f32 %v1407, %v1415
        %v1423 = vmul.f32 %v1408, %v1419
        %s1424 = scalar_lea.vmem %s8, 32
        %v1425 = vld [vmem:[%s1424] sm:$0xf]
        %v1426 = vpack.c.bf16 %v1422, %v1422
        %v1427 = vpack.c.bf16 %v1423, %v1423
        %v1429 = vsel %vm738, %v1425, 0
        %v1432 = vsel %vm742, %v1426, 0
        %v1435 = vsel %vm742, %v1427, 0
        %1437 = vmatprep.subr.bf16.mxu0 0
        %1438 = vmatpush1.bf16.msra.mxu0 0
        %1439 = vmatprep.subr.bf16.mxu0 0
        %1440 = vmatpush1.bf16.msra.mxu0 0
        %1441 = vmatprep.subr.bf16.mxu0 0
        %1442 = vmatpush1.bf16.msra.mxu0 0
        %1443 = vmatprep.subr.bf16.mxu0 0
        %1444 = vmatpush1.bf16.msra.mxu0 0
        %1445 = vmatprep.subr.bf16.mxu0 0
        %1446 = vmatpush1.bf16.msra.mxu0 0
        %1447 = vmatprep.subr.bf16.mxu0 0
        %1448 = vmatpush1.bf16.msra.mxu0 0
        %1449 = vmatprep.subr.bf16.mxu0 0
        %1450 = vmatpush1.bf16.msra.mxu0 0
        %1451 = vmatprep.subr.bf16.mxu0 %v1435
        %1452 = vmatpush1.bf16.msra.mxu0 %v1432
        %1453 = vmatprep.subr.bf16.mxu0 0
        %1454 = vmatpush2.bf16.msra.mxu0 0
        %1455 = vmatprep.subr.bf16.mxu0 0
        %1456 = vmatpush2.bf16.msra.mxu0 0
        %1457 = vmatprep.subr.bf16.mxu0 0
        %1458 = vmatpush2.bf16.msra.mxu0 0
        %1459 = vmatprep.subr.bf16.mxu0 0
        %1460 = vmatpush2.bf16.msra.mxu0 0
        %1461 = vmatprep.subr.bf16.mxu0 0
        %1462 = vmatpush2.bf16.msra.mxu0 0
        %1463 = vmatprep.subr.bf16.mxu0 0
        %1464 = vmatpush2.bf16.msra.mxu0 0
        %1465 = vmatprep.subr.bf16.mxu0 0
        %1466 = vmatpush2.bf16.msra.mxu0 0
        %1467 = vmatprep.subr.bf16.mxu0 0
        %1468 = vmatpush2.bf16.msra.mxu0 0
        %1469 = vmatprep.mubr.bf16.mxu0 0
        %1470 = vmatmul.mubr.bf16.gmra.mxu0 %v1429
        %v1471 = vpop.f32.mrf.mxu0
        %v1472 = vadd.f32 0.0, %v1471
        %v1473 = vpop.f32.mrf.mxu0
        %v1474 = vadd.f32 0.0, %v1473
        %v1475 = vpop.f32.mrf.mxu0
        %v1476 = vpop.f32.mrf.mxu0
        %1477 = vdwg.mxu0
        %v1478 = vadd.f32 %v1400, %v1472
        %v1479 = vadd.f32 %v1401, %v1474
        %v1480 = vld [vmem:[%s9] sm:$0xff]
        %1482 = vset.pattern.permute.xlu0 0
        %1483 = vperm.xlu0 %1482, %v1480
        %v1484 = vpop.permute.xlu0 %1483
        %v1486 = vadd.f32 %v1478, %v1484
        %v1487 = vadd.f32 %v1479, %v1484
        %v1488 = vxor.u32 %v1486, 2147483648
        %v1489 = vxor.u32 %v1487, 2147483648
        %v1490 = vmul.f32 %v1488, 1.442695
        %v1491 = vpow.pop %v1490
        %v1492 = vmul.f32 %v1489, 1.442695
        %v1493 = vpow.pop %v1492
        %v1494 = vadd.f32 %v1491, 1.0
        %v1495 = vadd.f32 %v1493, 1.0
        %v1496 = vrcp.pop %v1494
        %v1497 = vmul.f32 1.0, %v1496
        %v1498 = vrcp.pop %v1495
        %v1499 = vmul.f32 1.0, %v1498
        %v1500 = vmul.f32 %v1486, %v1497
        %v1501 = vmul.f32 %v1487, %v1499
        %v1502 = vadd.f32 %v1500, %v662
        %v1503 = vadd.f32 %v1501, %v663
        %v1504 = vpack.c.bf16 %v1502, %v1502
        %v1505 = vpack.c.bf16 %v1503, %v1503
        %v1506 = vld [vmem:[%s10] sm:$0xf]
        %v1507 = vld [vmem:[%s11] sm:$0xff]
        %1509 = vset.pattern.permute.xlu0 0
        %1510 = vperm.xlu0 %1509, %v1507
        %v1511 = vpop.permute.xlu0 %1510
        %v1514 = vsel %vm738, %v1506, 0
        %v1517 = vsel %vm742, %v1504, 0
        %v1520 = vsel %vm742, %v1505, 0
        %1522 = vmatprep.subr.bf16.mxu0 0
        %1523 = vmatpush1.bf16.msra.mxu0 0
        %1524 = vmatprep.subr.bf16.mxu0 0
        %1525 = vmatpush1.bf16.msra.mxu0 0
        %1526 = vmatprep.subr.bf16.mxu0 0
        %1527 = vmatpush1.bf16.msra.mxu0 0
        %1528 = vmatprep.subr.bf16.mxu0 0
        %1529 = vmatpush1.bf16.msra.mxu0 0
        %1530 = vmatprep.subr.bf16.mxu0 0
        %1531 = vmatpush1.bf16.msra.mxu0 0
        %1532 = vmatprep.subr.bf16.mxu0 0
        %1533 = vmatpush1.bf16.msra.mxu0 0
        %1534 = vmatprep.subr.bf16.mxu0 0
        %1535 = vmatpush1.bf16.msra.mxu0 0
        %1536 = vmatprep.subr.bf16.mxu0 %v1520
        %1537 = vmatpush1.bf16.msra.mxu0 %v1517
        %1538 = vmatprep.subr.bf16.mxu0 0
        %1539 = vmatpush2.bf16.msra.mxu0 0
        %1540 = vmatprep.subr.bf16.mxu0 0
        %1541 = vmatpush2.bf16.msra.mxu0 0
        %1542 = vmatprep.subr.bf16.mxu0 0
        %1543 = vmatpush2.bf16.msra.mxu0 0
        %1544 = vmatprep.subr.bf16.mxu0 0
        %1545 = vmatpush2.bf16.msra.mxu0 0
        %1546 = vmatprep.subr.bf16.mxu0 0
        %1547 = vmatpush2.bf16.msra.mxu0 0
        %1548 = vmatprep.subr.bf16.mxu0 0
        %1549 = vmatpush2.bf16.msra.mxu0 0
        %1550 = vmatprep.subr.bf16.mxu0 0
        %1551 = vmatpush2.bf16.msra.mxu0 0
        %1552 = vmatprep.subr.bf16.mxu0 0
        %1553 = vmatpush2.bf16.msra.mxu0 0
        %1554 = vmatprep.mubr.bf16.mxu0 0
        %1555 = vmatmul.mubr.bf16.gmra.mxu0 %v1514
        %v1556 = vpop.f32.mrf.mxu0
        %v1557 = vadd.f32 %v1511, %v1556
        %v1558 = vpop.f32.mrf.mxu0
        %v1559 = vadd.f32 %v1511, %v1558
        %v1560 = vpop.f32.mrf.mxu0
        %v1561 = vpop.f32.mrf.mxu0
        %1562 = vdwg.mxu0
        %v1563 = vxor.u32 %v1557, 2147483648
        %v1564 = vxor.u32 %v1559, 2147483648
        %v1565 = vmul.f32 %v1563, 1.442695
        %v1566 = vpow.pop %v1565
        %v1567 = vmul.f32 %v1564, 1.442695
        %v1568 = vpow.pop %v1567
        %v1569 = vadd.f32 %v1566, 1.0
        %v1570 = vadd.f32 %v1568, 1.0
        %v1571 = vrcp.pop %v1569
        %v1572 = vmul.f32 1.0, %v1571
        %v1573 = vrcp.pop %v1570
        %v1574 = vmul.f32 1.0, %v1573
        %v1575 = vmul.f32 %v1557, %v1572
        %v1576 = vmul.f32 %v1559, %v1574
        %1577 = vrot.lane.b32.xlu0 %v1575, 17
        %v1578 = vpop.permute.xlu0 %1577
        %1579 = vrot.lane.b32.xlu0 %v1576, 17
        %v1580 = vpop.permute.xlu0 %1579
        %v1581 = vsel %vm810, %v1578, %v1580
        %v1582 = vsel %vm810, %v1580, %v1578
        %v1583 = vmul.f32 %v1582, %v818
        %v1584 = vmul.f32 %v1581, %v822
        %v1585 = vld [vmem:[%s12] sm:$0xf]
        %v1586 = vpack.c.bf16 %v1583, %v1583
        %v1587 = vpack.c.bf16 %v1584, %v1584
        %1588 = vrot.lane.b32.xlu0 %v1575, 16
        %v1589 = vpop.permute.xlu0 %1588
        %1590 = vrot.lane.b32.xlu0 %v1576, 16
        %v1591 = vpop.permute.xlu0 %1590
        %v1592 = vsel %vm834, %v1589, %v1591
        %v1593 = vsel %vm834, %v1591, %v1589
        %v1594 = vmul.f32 %v1593, %v843
        %v1595 = vmul.f32 %v1592, %v847
        %s1596 = scalar_lea.vmem %s12, 4
        %v1597 = vld [vmem:[%s1596] sm:$0xf]
        %v1598 = vpack.c.bf16 %v1594, %v1594
        %v1599 = vpack.c.bf16 %v1595, %v1595
        %v1601 = vsel %vm738, %v1597, 0
        %v1604 = vsel %vm742, %v1598, 0
        %v1607 = vsel %vm742, %v1599, 0
        %1609 = vmatprep.subr.bf16.mxu0 0
        %1610 = vmatpush1.bf16.msra.mxu0 0
        %1611 = vmatprep.subr.bf16.mxu0 0
        %1612 = vmatpush1.bf16.msra.mxu0 0
        %1613 = vmatprep.subr.bf16.mxu0 0
        %1614 = vmatpush1.bf16.msra.mxu0 0
        %1615 = vmatprep.subr.bf16.mxu0 0
        %1616 = vmatpush1.bf16.msra.mxu0 0
        %1617 = vmatprep.subr.bf16.mxu0 0
        %1618 = vmatpush1.bf16.msra.mxu0 0
        %1619 = vmatprep.subr.bf16.mxu0 0
        %1620 = vmatpush1.bf16.msra.mxu0 0
        %1621 = vmatprep.subr.bf16.mxu0 0
        %1622 = vmatpush1.bf16.msra.mxu0 0
        %1623 = vmatprep.subr.bf16.mxu0 %v1607
        %1624 = vmatpush1.bf16.msra.mxu0 %v1604
        %1625 = vmatprep.subr.bf16.mxu0 0
        %1626 = vmatpush2.bf16.msra.mxu0 0
        %1627 = vmatprep.subr.bf16.mxu0 0
        %1628 = vmatpush2.bf16.msra.mxu0 0
        %1629 = vmatprep.subr.bf16.mxu0 0
        %1630 = vmatpush2.bf16.msra.mxu0 0
        %1631 = vmatprep.subr.bf16.mxu0 0
        %1632 = vmatpush2.bf16.msra.mxu0 0
        %1633 = vmatprep.subr.bf16.mxu0 0
        %1634 = vmatpush2.bf16.msra.mxu0 0
        %1635 = vmatprep.subr.bf16.mxu0 0
        %1636 = vmatpush2.bf16.msra.mxu0 0
        %1637 = vmatprep.subr.bf16.mxu0 0
        %1638 = vmatpush2.bf16.msra.mxu0 0
        %1639 = vmatprep.subr.bf16.mxu0 0
        %1640 = vmatpush2.bf16.msra.mxu0 0
        %1641 = vmatprep.mubr.bf16.mxu0 0
        %1642 = vmatmul.mubr.bf16.gmra.mxu0 %v1601
        %v1643 = vpop.f32.mrf.mxu0
        %v1644 = vadd.f32 0.0, %v1643
        %v1645 = vpop.f32.mrf.mxu0
        %v1646 = vadd.f32 0.0, %v1645
        %v1647 = vpop.f32.mrf.mxu0
        %v1648 = vpop.f32.mrf.mxu0
        %1649 = vdwg.mxu0
        %v1651 = vsel %vm738, %v1585, 0
        %v1654 = vsel %vm742, %v1586, 0
        %v1657 = vsel %vm742, %v1587, 0
        %1659 = vmatprep.subr.bf16.mxu0 0
        %1660 = vmatpush1.bf16.msra.mxu0 0
        %1661 = vmatprep.subr.bf16.mxu0 0
        %1662 = vmatpush1.bf16.msra.mxu0 0
        %1663 = vmatprep.subr.bf16.mxu0 0
        %1664 = vmatpush1.bf16.msra.mxu0 0
        %1665 = vmatprep.subr.bf16.mxu0 0
        %1666 = vmatpush1.bf16.msra.mxu0 0
        %1667 = vmatprep.subr.bf16.mxu0 0
        %1668 = vmatpush1.bf16.msra.mxu0 0
        %1669 = vmatprep.subr.bf16.mxu0 0
        %1670 = vmatpush1.bf16.msra.mxu0 0
        %1671 = vmatprep.subr.bf16.mxu0 0
        %1672 = vmatpush1.bf16.msra.mxu0 0
        %1673 = vmatprep.subr.bf16.mxu0 %v1657
        %1674 = vmatpush1.bf16.msra.mxu0 %v1654
        %1675 = vmatprep.subr.bf16.mxu0 0
        %1676 = vmatpush2.bf16.msra.mxu0 0
        %1677 = vmatprep.subr.bf16.mxu0 0
        %1678 = vmatpush2.bf16.msra.mxu0 0
        %1679 = vmatprep.subr.bf16.mxu0 0
        %1680 = vmatpush2.bf16.msra.mxu0 0
        %1681 = vmatprep.subr.bf16.mxu0 0
        %1682 = vmatpush2.bf16.msra.mxu0 0
        %1683 = vmatprep.subr.bf16.mxu0 0
        %1684 = vmatpush2.bf16.msra.mxu0 0
        %1685 = vmatprep.subr.bf16.mxu0 0
        %1686 = vmatpush2.bf16.msra.mxu0 0
        %1687 = vmatprep.subr.bf16.mxu0 0
        %1688 = vmatpush2.bf16.msra.mxu0 0
        %1689 = vmatprep.subr.bf16.mxu0 0
        %1690 = vmatpush2.bf16.msra.mxu0 0
        %1691 = vmatprep.mubr.bf16.mxu0 0
        %1692 = vmatmul.mubr.bf16.gmra.mxu0 %v1651
        %v1693 = vpop.f32.mrf.mxu0
        %v1694 = vadd.f32 %v1644, %v1693
        %v1695 = vpop.f32.mrf.mxu0
        %v1696 = vadd.f32 %v1646, %v1695
        %v1697 = vpop.f32.mrf.mxu0
        %v1698 = vpop.f32.mrf.mxu0
        %1699 = vdwg.mxu0
        %1700 = vrot.lane.b32.xlu0 %v1575, 15
        %v1701 = vpop.permute.xlu0 %1700
        %1702 = vrot.lane.b32.xlu0 %v1576, 15
        %v1703 = vpop.permute.xlu0 %1702
        %v1704 = vsel %vm960, %v1701, %v1703
        %v1705 = vsel %vm960, %v1703, %v1701
        %v1706 = vmul.f32 %v1705, %v969
        %v1707 = vmul.f32 %v1704, %v973
        %s1708 = scalar_lea.vmem %s12, 8
        %v1709 = vld [vmem:[%s1708] sm:$0xf]
        %v1710 = vpack.c.bf16 %v1706, %v1706
        %v1711 = vpack.c.bf16 %v1707, %v1707
        %v1713 = vsel %vm738, %v1709, 0
        %v1716 = vsel %vm742, %v1710, 0
        %v1719 = vsel %vm742, %v1711, 0
        %1721 = vmatprep.subr.bf16.mxu0 0
        %1722 = vmatpush1.bf16.msra.mxu0 0
        %1723 = vmatprep.subr.bf16.mxu0 0
        %1724 = vmatpush1.bf16.msra.mxu0 0
        %1725 = vmatprep.subr.bf16.mxu0 0
        %1726 = vmatpush1.bf16.msra.mxu0 0
        %1727 = vmatprep.subr.bf16.mxu0 0
        %1728 = vmatpush1.bf16.msra.mxu0 0
        %1729 = vmatprep.subr.bf16.mxu0 0
        %1730 = vmatpush1.bf16.msra.mxu0 0
        %1731 = vmatprep.subr.bf16.mxu0 0
        %1732 = vmatpush1.bf16.msra.mxu0 0
        %1733 = vmatprep.subr.bf16.mxu0 0
        %1734 = vmatpush1.bf16.msra.mxu0 0
        %1735 = vmatprep.subr.bf16.mxu0 %v1719
        %1736 = vmatpush1.bf16.msra.mxu0 %v1716
        %1737 = vmatprep.subr.bf16.mxu0 0
        %1738 = vmatpush2.bf16.msra.mxu0 0
        %1739 = vmatprep.subr.bf16.mxu0 0
        %1740 = vmatpush2.bf16.msra.mxu0 0
        %1741 = vmatprep.subr.bf16.mxu0 0
        %1742 = vmatpush2.bf16.msra.mxu0 0
        %1743 = vmatprep.subr.bf16.mxu0 0
        %1744 = vmatpush2.bf16.msra.mxu0 0
        %1745 = vmatprep.subr.bf16.mxu0 0
        %1746 = vmatpush2.bf16.msra.mxu0 0
        %1747 = vmatprep.subr.bf16.mxu0 0
        %1748 = vmatpush2.bf16.msra.mxu0 0
        %1749 = vmatprep.subr.bf16.mxu0 0
        %1750 = vmatpush2.bf16.msra.mxu0 0
        %1751 = vmatprep.subr.bf16.mxu0 0
        %1752 = vmatpush2.bf16.msra.mxu0 0
        %1753 = vmatprep.mubr.bf16.mxu0 0
        %1754 = vmatmul.mubr.bf16.gmra.mxu0 %v1713
        %v1755 = vpop.f32.mrf.mxu0
        %v1756 = vadd.f32 0.0, %v1755
        %v1757 = vpop.f32.mrf.mxu0
        %v1758 = vadd.f32 0.0, %v1757
        %v1759 = vpop.f32.mrf.mxu0
        %v1760 = vpop.f32.mrf.mxu0
        %1761 = vdwg.mxu0
        %v1762 = vadd.f32 %v1694, %v1756
        %v1763 = vadd.f32 %v1696, %v1758
        %1764 = vrot.lane.b32.xlu0 %v1575, 1
        %v1765 = vpop.permute.xlu0 %1764
        %1766 = vrot.lane.b32.xlu0 %v1576, 1
        %v1767 = vpop.permute.xlu0 %1766
        %v1768 = vsel %vm1038, %v1765, %v1767
        %v1769 = vsel %vm1038, %v1767, %v1765
        %v1770 = vmul.f32 %v1769, %v1047
        %v1771 = vmul.f32 %v1768, %v1051
        %s1772 = scalar_lea.vmem %s12, 12
        %v1773 = vld [vmem:[%s1772] sm:$0xf]
        %v1774 = vpack.c.bf16 %v1770, %v1770
        %v1775 = vpack.c.bf16 %v1771, %v1771
        %v1777 = vsel %vm738, %v1773, 0
        %v1780 = vsel %vm742, %v1774, 0
        %v1783 = vsel %vm742, %v1775, 0
        %1785 = vmatprep.subr.bf16.mxu0 0
        %1786 = vmatpush1.bf16.msra.mxu0 0
        %1787 = vmatprep.subr.bf16.mxu0 0
        %1788 = vmatpush1.bf16.msra.mxu0 0
        %1789 = vmatprep.subr.bf16.mxu0 0
        %1790 = vmatpush1.bf16.msra.mxu0 0
        %1791 = vmatprep.subr.bf16.mxu0 0
        %1792 = vmatpush1.bf16.msra.mxu0 0
        %1793 = vmatprep.subr.bf16.mxu0 0
        %1794 = vmatpush1.bf16.msra.mxu0 0
        %1795 = vmatprep.subr.bf16.mxu0 0
        %1796 = vmatpush1.bf16.msra.mxu0 0
        %1797 = vmatprep.subr.bf16.mxu0 0
        %1798 = vmatpush1.bf16.msra.mxu0 0
        %1799 = vmatprep.subr.bf16.mxu0 %v1783
        %1800 = vmatpush1.bf16.msra.mxu0 %v1780
        %1801 = vmatprep.subr.bf16.mxu0 0
        %1802 = vmatpush2.bf16.msra.mxu0 0
        %1803 = vmatprep.subr.bf16.mxu0 0
        %1804 = vmatpush2.bf16.msra.mxu0 0
        %1805 = vmatprep.subr.bf16.mxu0 0
        %1806 = vmatpush2.bf16.msra.mxu0 0
        %1807 = vmatprep.subr.bf16.mxu0 0
        %1808 = vmatpush2.bf16.msra.mxu0 0
        %1809 = vmatprep.subr.bf16.mxu0 0
        %1810 = vmatpush2.bf16.msra.mxu0 0
        %1811 = vmatprep.subr.bf16.mxu0 0
        %1812 = vmatpush2.bf16.msra.mxu0 0
        %1813 = vmatprep.subr.bf16.mxu0 0
        %1814 = vmatpush2.bf16.msra.mxu0 0
        %1815 = vmatprep.subr.bf16.mxu0 0
        %1816 = vmatpush2.bf16.msra.mxu0 0
        %1817 = vmatprep.mubr.bf16.mxu0 0
        %1818 = vmatmul.mubr.bf16.gmra.mxu0 %v1777
        %v1819 = vpop.f32.mrf.mxu0
        %v1820 = vadd.f32 0.0, %v1819
        %v1821 = vpop.f32.mrf.mxu0
        %v1822 = vadd.f32 0.0, %v1821
        %v1823 = vpop.f32.mrf.mxu0
        %v1824 = vpop.f32.mrf.mxu0
        %1825 = vdwg.mxu0
        %v1826 = vadd.f32 %v1762, %v1820
        %v1827 = vadd.f32 %v1763, %v1822
        %s1828 = scalar_lea.vmem %s12, 16
        %v1829 = vld [vmem:[%s1828] sm:$0xf]
        %v1830 = vpack.c.bf16 %v1575, %v1575
        %v1831 = vpack.c.bf16 %v1576, %v1576
        %v1833 = vsel %vm738, %v1829, 0
        %v1836 = vsel %vm742, %v1830, 0
        %v1839 = vsel %vm742, %v1831, 0
        %1841 = vmatprep.subr.bf16.mxu0 0
        %1842 = vmatpush1.bf16.msra.mxu0 0
        %1843 = vmatprep.subr.bf16.mxu0 0
        %1844 = vmatpush1.bf16.msra.mxu0 0
        %1845 = vmatprep.subr.bf16.mxu0 0
        %1846 = vmatpush1.bf16.msra.mxu0 0
        %1847 = vmatprep.subr.bf16.mxu0 0
        %1848 = vmatpush1.bf16.msra.mxu0 0
        %1849 = vmatprep.subr.bf16.mxu0 0
        %1850 = vmatpush1.bf16.msra.mxu0 0
        %1851 = vmatprep.subr.bf16.mxu0 0
        %1852 = vmatpush1.bf16.msra.mxu0 0
        %1853 = vmatprep.subr.bf16.mxu0 0
        %1854 = vmatpush1.bf16.msra.mxu0 0
        %1855 = vmatprep.subr.bf16.mxu0 %v1839
        %1856 = vmatpush1.bf16.msra.mxu0 %v1836
        %1857 = vmatprep.subr.bf16.mxu0 0
        %1858 = vmatpush2.bf16.msra.mxu0 0
        %1859 = vmatprep.subr.bf16.mxu0 0
        %1860 = vmatpush2.bf16.msra.mxu0 0
        %1861 = vmatprep.subr.bf16.mxu0 0
        %1862 = vmatpush2.bf16.msra.mxu0 0
        %1863 = vmatprep.subr.bf16.mxu0 0
        %1864 = vmatpush2.bf16.msra.mxu0 0
        %1865 = vmatprep.subr.bf16.mxu0 0
        %1866 = vmatpush2.bf16.msra.mxu0 0
        %1867 = vmatprep.subr.bf16.mxu0 0
        %1868 = vmatpush2.bf16.msra.mxu0 0
        %1869 = vmatprep.subr.bf16.mxu0 0
        %1870 = vmatpush2.bf16.msra.mxu0 0
        %1871 = vmatprep.subr.bf16.mxu0 0
        %1872 = vmatpush2.bf16.msra.mxu0 0
        %1873 = vmatprep.mubr.bf16.mxu0 0
        %1874 = vmatmul.mubr.bf16.gmra.mxu0 %v1833
        %v1875 = vpop.f32.mrf.mxu0
        %v1876 = vadd.f32 0.0, %v1875
        %v1877 = vpop.f32.mrf.mxu0
        %v1878 = vadd.f32 0.0, %v1877
        %v1879 = vpop.f32.mrf.mxu0
        %v1880 = vpop.f32.mrf.mxu0
        %1881 = vdwg.mxu0
        %v1882 = vadd.f32 %v1826, %v1876
        %v1883 = vadd.f32 %v1827, %v1878
        %1884 = vrot.lane.b32.xlu0 %v1575, 127
        %v1885 = vpop.permute.xlu0 %1884
        %1886 = vrot.lane.b32.xlu0 %v1576, 127
        %v1887 = vpop.permute.xlu0 %1886
        %v1888 = vsel %vm1172, %v1885, %v1887
        %v1889 = vsel %vm1172, %v1887, %v1885
        %v1890 = vmul.f32 %v1888, %v1181
        %v1891 = vmul.f32 %v1889, %v1185
        %s1892 = scalar_lea.vmem %s12, 20
        %v1893 = vld [vmem:[%s1892] sm:$0xf]
        %v1894 = vpack.c.bf16 %v1890, %v1890
        %v1895 = vpack.c.bf16 %v1891, %v1891
        %v1897 = vsel %vm738, %v1893, 0
        %v1900 = vsel %vm742, %v1894, 0
        %v1903 = vsel %vm742, %v1895, 0
        %1905 = vmatprep.subr.bf16.mxu0 0
        %1906 = vmatpush1.bf16.msra.mxu0 0
        %1907 = vmatprep.subr.bf16.mxu0 0
        %1908 = vmatpush1.bf16.msra.mxu0 0
        %1909 = vmatprep.subr.bf16.mxu0 0
        %1910 = vmatpush1.bf16.msra.mxu0 0
        %1911 = vmatprep.subr.bf16.mxu0 0
        %1912 = vmatpush1.bf16.msra.mxu0 0
        %1913 = vmatprep.subr.bf16.mxu0 0
        %1914 = vmatpush1.bf16.msra.mxu0 0
        %1915 = vmatprep.subr.bf16.mxu0 0
        %1916 = vmatpush1.bf16.msra.mxu0 0
        %1917 = vmatprep.subr.bf16.mxu0 0
        %1918 = vmatpush1.bf16.msra.mxu0 0
        %1919 = vmatprep.subr.bf16.mxu0 %v1903
        %1920 = vmatpush1.bf16.msra.mxu0 %v1900
        %1921 = vmatprep.subr.bf16.mxu0 0
        %1922 = vmatpush2.bf16.msra.mxu0 0
        %1923 = vmatprep.subr.bf16.mxu0 0
        %1924 = vmatpush2.bf16.msra.mxu0 0
        %1925 = vmatprep.subr.bf16.mxu0 0
        %1926 = vmatpush2.bf16.msra.mxu0 0
        %1927 = vmatprep.subr.bf16.mxu0 0
        %1928 = vmatpush2.bf16.msra.mxu0 0
        %1929 = vmatprep.subr.bf16.mxu0 0
        %1930 = vmatpush2.bf16.msra.mxu0 0
        %1931 = vmatprep.subr.bf16.mxu0 0
        %1932 = vmatpush2.bf16.msra.mxu0 0
        %1933 = vmatprep.subr.bf16.mxu0 0
        %1934 = vmatpush2.bf16.msra.mxu0 0
        %1935 = vmatprep.subr.bf16.mxu0 0
        %1936 = vmatpush2.bf16.msra.mxu0 0
        %1937 = vmatprep.mubr.bf16.mxu0 0
        %1938 = vmatmul.mubr.bf16.gmra.mxu0 %v1897
        %v1939 = vpop.f32.mrf.mxu0
        %v1940 = vadd.f32 0.0, %v1939
        %v1941 = vpop.f32.mrf.mxu0
        %v1942 = vadd.f32 0.0, %v1941
        %v1943 = vpop.f32.mrf.mxu0
        %v1944 = vpop.f32.mrf.mxu0
        %1945 = vdwg.mxu0
        %v1946 = vadd.f32 %v1882, %v1940
        %v1947 = vadd.f32 %v1883, %v1942
        %1948 = vrot.lane.b32.xlu0 %v1575, 113
        %v1949 = vpop.permute.xlu0 %1948
        %1950 = vrot.lane.b32.xlu0 %v1576, 113
        %v1951 = vpop.permute.xlu0 %1950
        %v1952 = vsel %vm1250, %v1949, %v1951
        %v1953 = vsel %vm1250, %v1951, %v1949
        %v1954 = vmul.f32 %v1952, %v1259
        %v1955 = vmul.f32 %v1953, %v1263
        %s1956 = scalar_lea.vmem %s12, 24
        %v1957 = vld [vmem:[%s1956] sm:$0xf]
        %v1958 = vpack.c.bf16 %v1954, %v1954
        %v1959 = vpack.c.bf16 %v1955, %v1955
        %v1961 = vsel %vm738, %v1957, 0
        %v1964 = vsel %vm742, %v1958, 0
        %v1967 = vsel %vm742, %v1959, 0
        %1969 = vmatprep.subr.bf16.mxu0 0
        %1970 = vmatpush1.bf16.msra.mxu0 0
        %1971 = vmatprep.subr.bf16.mxu0 0
        %1972 = vmatpush1.bf16.msra.mxu0 0
        %1973 = vmatprep.subr.bf16.mxu0 0
        %1974 = vmatpush1.bf16.msra.mxu0 0
        %1975 = vmatprep.subr.bf16.mxu0 0
        %1976 = vmatpush1.bf16.msra.mxu0 0
        %1977 = vmatprep.subr.bf16.mxu0 0
        %1978 = vmatpush1.bf16.msra.mxu0 0
        %1979 = vmatprep.subr.bf16.mxu0 0
        %1980 = vmatpush1.bf16.msra.mxu0 0
        %1981 = vmatprep.subr.bf16.mxu0 0
        %1982 = vmatpush1.bf16.msra.mxu0 0
        %1983 = vmatprep.subr.bf16.mxu0 %v1967
        %1984 = vmatpush1.bf16.msra.mxu0 %v1964
        %1985 = vmatprep.subr.bf16.mxu0 0
        %1986 = vmatpush2.bf16.msra.mxu0 0
        %1987 = vmatprep.subr.bf16.mxu0 0
        %1988 = vmatpush2.bf16.msra.mxu0 0
        %1989 = vmatprep.subr.bf16.mxu0 0
        %1990 = vmatpush2.bf16.msra.mxu0 0
        %1991 = vmatprep.subr.bf16.mxu0 0
        %1992 = vmatpush2.bf16.msra.mxu0 0
        %1993 = vmatprep.subr.bf16.mxu0 0
        %1994 = vmatpush2.bf16.msra.mxu0 0
        %1995 = vmatprep.subr.bf16.mxu0 0
        %1996 = vmatpush2.bf16.msra.mxu0 0
        %1997 = vmatprep.subr.bf16.mxu0 0
        %1998 = vmatpush2.bf16.msra.mxu0 0
        %1999 = vmatprep.subr.bf16.mxu0 0
        %2000 = vmatpush2.bf16.msra.mxu0 0
        %2001 = vmatprep.mubr.bf16.mxu0 0
        %2002 = vmatmul.mubr.bf16.gmra.mxu0 %v1961
        %v2003 = vpop.f32.mrf.mxu0
        %v2004 = vadd.f32 0.0, %v2003
        %v2005 = vpop.f32.mrf.mxu0
        %v2006 = vadd.f32 0.0, %v2005
        %v2007 = vpop.f32.mrf.mxu0
        %v2008 = vpop.f32.mrf.mxu0
        %2009 = vdwg.mxu0
        %v2010 = vadd.f32 %v1946, %v2004
        %v2011 = vadd.f32 %v1947, %v2006
        %2012 = vrot.lane.b32.xlu0 %v1575, 112
        %v2013 = vpop.permute.xlu0 %2012
        %2014 = vrot.lane.b32.xlu0 %v1576, 112
        %v2015 = vpop.permute.xlu0 %2014
        %v2016 = vsel %vm1328, %v2013, %v2015
        %v2017 = vsel %vm1328, %v2015, %v2013
        %v2018 = vmul.f32 %v2016, %v1337
        %v2019 = vmul.f32 %v2017, %v1341
        %s2020 = scalar_lea.vmem %s12, 28
        %v2021 = vld [vmem:[%s2020] sm:$0xf]
        %v2022 = vpack.c.bf16 %v2018, %v2018
        %v2023 = vpack.c.bf16 %v2019, %v2019
        %v2025 = vsel %vm738, %v2021, 0
        %v2028 = vsel %vm742, %v2022, 0
        %v2031 = vsel %vm742, %v2023, 0
        %2033 = vmatprep.subr.bf16.mxu0 0
        %2034 = vmatpush1.bf16.msra.mxu0 0
        %2035 = vmatprep.subr.bf16.mxu0 0
        %2036 = vmatpush1.bf16.msra.mxu0 0
        %2037 = vmatprep.subr.bf16.mxu0 0
        %2038 = vmatpush1.bf16.msra.mxu0 0
        %2039 = vmatprep.subr.bf16.mxu0 0
        %2040 = vmatpush1.bf16.msra.mxu0 0
        %2041 = vmatprep.subr.bf16.mxu0 0
        %2042 = vmatpush1.bf16.msra.mxu0 0
        %2043 = vmatprep.subr.bf16.mxu0 0
        %2044 = vmatpush1.bf16.msra.mxu0 0
        %2045 = vmatprep.subr.bf16.mxu0 0
        %2046 = vmatpush1.bf16.msra.mxu0 0
        %2047 = vmatprep.subr.bf16.mxu0 %v2031
        %2048 = vmatpush1.bf16.msra.mxu0 %v2028
        %2049 = vmatprep.subr.bf16.mxu0 0
        %2050 = vmatpush2.bf16.msra.mxu0 0
        %2051 = vmatprep.subr.bf16.mxu0 0
        %2052 = vmatpush2.bf16.msra.mxu0 0
        %2053 = vmatprep.subr.bf16.mxu0 0
        %2054 = vmatpush2.bf16.msra.mxu0 0
        %2055 = vmatprep.subr.bf16.mxu0 0
        %2056 = vmatpush2.bf16.msra.mxu0 0
        %2057 = vmatprep.subr.bf16.mxu0 0
        %2058 = vmatpush2.bf16.msra.mxu0 0
        %2059 = vmatprep.subr.bf16.mxu0 0
        %2060 = vmatpush2.bf16.msra.mxu0 0
        %2061 = vmatprep.subr.bf16.mxu0 0
        %2062 = vmatpush2.bf16.msra.mxu0 0
        %2063 = vmatprep.subr.bf16.mxu0 0
        %2064 = vmatpush2.bf16.msra.mxu0 0
        %2065 = vmatprep.mubr.bf16.mxu0 0
        %2066 = vmatmul.mubr.bf16.gmra.mxu0 %v2025
        %v2067 = vpop.f32.mrf.mxu0
        %v2068 = vadd.f32 0.0, %v2067
        %v2069 = vpop.f32.mrf.mxu0
        %v2070 = vadd.f32 0.0, %v2069
        %v2071 = vpop.f32.mrf.mxu0
        %v2072 = vpop.f32.mrf.mxu0
        %2073 = vdwg.mxu0
        %v2074 = vadd.f32 %v2010, %v2068
        %v2075 = vadd.f32 %v2011, %v2070
        %2076 = vrot.lane.b32.xlu0 %v1575, 111
        %v2077 = vpop.permute.xlu0 %2076
        %2078 = vrot.lane.b32.xlu0 %v1576, 111
        %v2079 = vpop.permute.xlu0 %2078
        %v2080 = vsel %vm1406, %v2077, %v2079
        %v2081 = vsel %vm1406, %v2079, %v2077
        %v2082 = vmul.f32 %v2080, %v1415
        %v2083 = vmul.f32 %v2081, %v1419
        %s2084 = scalar_lea.vmem %s12, 32
        %v2085 = vld [vmem:[%s2084] sm:$0xf]
        %v2086 = vpack.c.bf16 %v2082, %v2082
        %v2087 = vpack.c.bf16 %v2083, %v2083
        %v2089 = vsel %vm738, %v2085, 0
        %v2092 = vsel %vm742, %v2086, 0
        %v2095 = vsel %vm742, %v2087, 0
        %2097 = vmatprep.subr.bf16.mxu0 0
        %2098 = vmatpush1.bf16.msra.mxu0 0
        %2099 = vmatprep.subr.bf16.mxu0 0
        %2100 = vmatpush1.bf16.msra.mxu0 0
        %2101 = vmatprep.subr.bf16.mxu0 0
        %2102 = vmatpush1.bf16.msra.mxu0 0
        %2103 = vmatprep.subr.bf16.mxu0 0
        %2104 = vmatpush1.bf16.msra.mxu0 0
        %2105 = vmatprep.subr.bf16.mxu0 0
        %2106 = vmatpush1.bf16.msra.mxu0 0
        %2107 = vmatprep.subr.bf16.mxu0 0
        %2108 = vmatpush1.bf16.msra.mxu0 0
        %2109 = vmatprep.subr.bf16.mxu0 0
        %2110 = vmatpush1.bf16.msra.mxu0 0
        %2111 = vmatprep.subr.bf16.mxu0 %v2095
        %2112 = vmatpush1.bf16.msra.mxu0 %v2092
        %2113 = vmatprep.subr.bf16.mxu0 0
        %2114 = vmatpush2.bf16.msra.mxu0 0
        %2115 = vmatprep.subr.bf16.mxu0 0
        %2116 = vmatpush2.bf16.msra.mxu0 0
        %2117 = vmatprep.subr.bf16.mxu0 0
        %2118 = vmatpush2.bf16.msra.mxu0 0
        %2119 = vmatprep.subr.bf16.mxu0 0
        %2120 = vmatpush2.bf16.msra.mxu0 0
        %2121 = vmatprep.subr.bf16.mxu0 0
        %2122 = vmatpush2.bf16.msra.mxu0 0
        %2123 = vmatprep.subr.bf16.mxu0 0
        %2124 = vmatpush2.bf16.msra.mxu0 0
        %2125 = vmatprep.subr.bf16.mxu0 0
        %2126 = vmatpush2.bf16.msra.mxu0 0
        %2127 = vmatprep.subr.bf16.mxu0 0
        %2128 = vmatpush2.bf16.msra.mxu0 0
        %2129 = vmatprep.mubr.bf16.mxu0 0
        %2130 = vmatmul.mubr.bf16.gmra.mxu0 %v2089
        %v2131 = vpop.f32.mrf.mxu0
        %v2132 = vadd.f32 0.0, %v2131
        %v2133 = vpop.f32.mrf.mxu0
        %v2134 = vadd.f32 0.0, %v2133
        %v2135 = vpop.f32.mrf.mxu0
        %v2136 = vpop.f32.mrf.mxu0
        %2137 = vdwg.mxu0
        %v2138 = vadd.f32 %v2074, %v2132
        %v2139 = vadd.f32 %v2075, %v2134
        %v2140 = vld [vmem:[%s13] sm:$0xff]
        %2142 = vset.pattern.permute.xlu0 0
        %2143 = vperm.xlu0 %2142, %v2140
        %v2144 = vpop.permute.xlu0 %2143
        %v2146 = vadd.f32 %v2138, %v2144
        %v2147 = vadd.f32 %v2139, %v2144
        %v2148 = vxor.u32 %v2146, 2147483648
        %v2149 = vxor.u32 %v2147, 2147483648
        %v2150 = vmul.f32 %v2148, 1.442695
        %v2151 = vpow.pop %v2150
        %v2152 = vmul.f32 %v2149, 1.442695
        %v2153 = vpow.pop %v2152
        %v2154 = vadd.f32 %v2151, 1.0
        %v2155 = vadd.f32 %v2153, 1.0
        %v2156 = vrcp.pop %v2154
        %v2157 = vmul.f32 1.0, %v2156
        %v2158 = vrcp.pop %v2155
        %v2159 = vmul.f32 1.0, %v2158
        %v2160 = vmul.f32 %v2146, %v2157
        %v2161 = vmul.f32 %v2147, %v2159
        %v2162 = vadd.f32 %v2160, %v1502
        %v2163 = vadd.f32 %v2161, %v1503
        %v2164 = vld [vmem:[%s14] sm:$0xf]
        %v2165 = vld [vmem:[%s14 + $0x4] sm:$0xf]
        %v2166 = vpack.c.bf16 %v2162, %v2162
        %v2167 = vpack.c.bf16 %v2163, %v2163
        %v2168 = vld [vmem:[%s15] sm:$0xf]
        %v2169 = vld [vmem:[%s15 + $0x4] sm:$0xf]
        %v2170 = vpack.c.bf16 %v727, %v727
        %v2171 = vpack.c.bf16 %v728, %v728
        %v2174 = vunpack.c.l.b16 %v2168
        %v2175 = vunpack.c.l.b16 %v2169
        %v2176 = vpack.c.b16 %v2175, %v2174
        %v2178 = vsel %vm738, %v2176, 0
        %v2181 = vsel %vm742, %v2170, 0
        %v2184 = vsel %vm742, %v2171, 0
        %2186 = vmatprep.subr.bf16.mxu0 0
        %2187 = vmatpush1.bf16.msra.mxu0 0
        %2188 = vmatprep.subr.bf16.mxu0 0
        %2189 = vmatpush1.bf16.msra.mxu0 0
        %2190 = vmatprep.subr.bf16.mxu0 0
        %2191 = vmatpush1.bf16.msra.mxu0 0
        %2192 = vmatprep.subr.bf16.mxu0 0
        %2193 = vmatpush1.bf16.msra.mxu0 0
        %2194 = vmatprep.subr.bf16.mxu0 0
        %2195 = vmatpush1.bf16.msra.mxu0 0
        %2196 = vmatprep.subr.bf16.mxu0 0
        %2197 = vmatpush1.bf16.msra.mxu0 0
        %2198 = vmatprep.subr.bf16.mxu0 0
        %2199 = vmatpush1.bf16.msra.mxu0 0
        %2200 = vmatprep.subr.bf16.mxu0 %v2184
        %2201 = vmatpush1.bf16.msra.mxu0 %v2181
        %2202 = vmatprep.subr.bf16.mxu0 0
        %2203 = vmatpush2.bf16.msra.mxu0 0
        %2204 = vmatprep.subr.bf16.mxu0 0
        %2205 = vmatpush2.bf16.msra.mxu0 0
        %2206 = vmatprep.subr.bf16.mxu0 0
        %2207 = vmatpush2.bf16.msra.mxu0 0
        %2208 = vmatprep.subr.bf16.mxu0 0
        %2209 = vmatpush2.bf16.msra.mxu0 0
        %2210 = vmatprep.subr.bf16.mxu0 0
        %2211 = vmatpush2.bf16.msra.mxu0 0
        %2212 = vmatprep.subr.bf16.mxu0 0
        %2213 = vmatpush2.bf16.msra.mxu0 0
        %2214 = vmatprep.subr.bf16.mxu0 0
        %2215 = vmatpush2.bf16.msra.mxu0 0
        %2216 = vmatprep.subr.bf16.mxu0 0
        %2217 = vmatpush2.bf16.msra.mxu0 0
        %2218 = vmatprep.mubr.bf16.mxu0 0
        %2219 = vmatmul.mubr.bf16.gmra.mxu0 %v2178
        %v2220 = vpop.f32.mrf.mxu0
        %v2221 = vadd.f32 0.0, %v2220
        %v2222 = vpop.f32.mrf.mxu0
        %v2223 = vadd.f32 0.0, %v2222
        %v2224 = vpop.f32.mrf.mxu0
        %v2225 = vadd.f32 0.0, %v2224
        %v2226 = vpop.f32.mrf.mxu0
        %v2227 = vadd.f32 0.0, %v2226
        %2228 = vdwg.mxu0
        %v2231 = vunpack.c.l.b16 %v2164
        %v2232 = vunpack.c.l.b16 %v2165
        %v2233 = vpack.c.b16 %v2232, %v2231
        %v2235 = vsel %vm738, %v2233, 0
        %v2238 = vsel %vm742, %v2166, 0
        %v2241 = vsel %vm742, %v2167, 0
        %2243 = vmatprep.subr.bf16.mxu0 0
        %2244 = vmatpush1.bf16.msra.mxu0 0
        %2245 = vmatprep.subr.bf16.mxu0 0
        %2246 = vmatpush1.bf16.msra.mxu0 0
        %2247 = vmatprep.subr.bf16.mxu0 0
        %2248 = vmatpush1.bf16.msra.mxu0 0
        %2249 = vmatprep.subr.bf16.mxu0 0
        %2250 = vmatpush1.bf16.msra.mxu0 0
        %2251 = vmatprep.subr.bf16.mxu0 0
        %2252 = vmatpush1.bf16.msra.mxu0 0
        %2253 = vmatprep.subr.bf16.mxu0 0
        %2254 = vmatpush1.bf16.msra.mxu0 0
        %2255 = vmatprep.subr.bf16.mxu0 0
        %2256 = vmatpush1.bf16.msra.mxu0 0
        %2257 = vmatprep.subr.bf16.mxu0 %v2241
        %2258 = vmatpush1.bf16.msra.mxu0 %v2238
        %2259 = vmatprep.subr.bf16.mxu0 0
        %2260 = vmatpush2.bf16.msra.mxu0 0
        %2261 = vmatprep.subr.bf16.mxu0 0
        %2262 = vmatpush2.bf16.msra.mxu0 0
        %2263 = vmatprep.subr.bf16.mxu0 0
        %2264 = vmatpush2.bf16.msra.mxu0 0
        %2265 = vmatprep.subr.bf16.mxu0 0
        %2266 = vmatpush2.bf16.msra.mxu0 0
        %2267 = vmatprep.subr.bf16.mxu0 0
        %2268 = vmatpush2.bf16.msra.mxu0 0
        %2269 = vmatprep.subr.bf16.mxu0 0
        %2270 = vmatpush2.bf16.msra.mxu0 0
        %2271 = vmatprep.subr.bf16.mxu0 0
        %2272 = vmatpush2.bf16.msra.mxu0 0
        %2273 = vmatprep.subr.bf16.mxu0 0
        %2274 = vmatpush2.bf16.msra.mxu0 0
        %2275 = vmatprep.mubr.bf16.mxu0 0
        %2276 = vmatmul.mubr.bf16.gmra.mxu0 %v2235
        %v2277 = vpop.f32.mrf.mxu0
        %v2278 = vadd.f32 %v2221, %v2277
        %v2279 = vpop.f32.mrf.mxu0
        %v2280 = vadd.f32 %v2223, %v2279
        %v2281 = vpop.f32.mrf.mxu0
        %v2282 = vadd.f32 %v2225, %v2281
        %v2283 = vpop.f32.mrf.mxu0
        %v2284 = vadd.f32 %v2227, %v2283
        %2285 = vdwg.mxu0
        %v2286 = vld [vmem:[%s16] sm:$0xff]
        %v2287 = vld [vmem:[%s16 + $0x8] sm:$0xff]
        %2289 = vset.pattern.permute.xlu0 0
        %2290 = vperm.xlu0 %2289, %v2286
        %v2291 = vpop.permute.xlu0 %2290
        %2294 = vset.pattern.permute.xlu0 0
        %2295 = vperm.xlu0 %2294, %v2287
        %v2296 = vpop.permute.xlu0 %2295
        %v2298 = vadd.f32 %v2278, %v2291
        %v2299 = vadd.f32 %v2280, %v2291
        %v2300 = vadd.f32 %v2282, %v2296
        %v2301 = vadd.f32 %v2284, %v2296
        %v2302 = vxor.u32 %v2298, 2147483648
        %v2303 = vxor.u32 %v2299, 2147483648
        %v2304 = vxor.u32 %v2300, 2147483648
        %v2305 = vxor.u32 %v2301, 2147483648
        %v2306 = vmul.f32 %v2302, 1.442695
        %v2307 = vpow.pop %v2306
        %v2308 = vmul.f32 %v2303, 1.442695
        %v2309 = vpow.pop %v2308
        %v2310 = vmul.f32 %v2304, 1.442695
        %v2311 = vpow.pop %v2310
        %v2312 = vmul.f32 %v2305, 1.442695
        %v2313 = vpow.pop %v2312
        %v2314 = vadd.f32 %v2307, 1.0
        %v2315 = vadd.f32 %v2309, 1.0
        %v2316 = vadd.f32 %v2311, 1.0
        %v2317 = vadd.f32 %v2313, 1.0
        %v2318 = vrcp.pop %v2314
        %v2319 = vmul.f32 1.0, %v2318
        %v2320 = vrcp.pop %v2315
        %v2321 = vmul.f32 1.0, %v2320
        %v2322 = vrcp.pop %v2316
        %v2323 = vmul.f32 1.0, %v2322
        %v2324 = vrcp.pop %v2317
        %v2325 = vmul.f32 1.0, %v2324
        %v2326 = vmul.f32 %v2298, %v2319
        %v2327 = vmul.f32 %v2299, %v2321
        %v2328 = vmul.f32 %v2300, %v2323
        %v2329 = vmul.f32 %v2301, %v2325
        %2330 = vst [vmem:[%s582] sm:$0xff] %v2326
        %2331 = vst [vmem:[%s582 + $0x8] sm:$0xff] %v2327
        %2332 = vst [vmem:[%s582 + $0x10] sm:$0xff] %v2328
        %2333 = vst [vmem:[%s582 + $0x18] sm:$0xff] %v2329
        %s2334 = sand.u32 %s398, 1
        %s2335 = sand.u32 %s398, 1
        %s2336 = smul.addr %s2335, 32
        %s2337 = scalar_lea.vmem [#allocation3], %s2336
        // Predicated region
        $region127: #{_lambda_.1} parent=121 // pred_check
          %p2338 = pneg %p408
        $region128: #{_lambda_.1} parent=121 // pred_check_branch
          %2340 = sbr.rel (%p2338) target = $region130
        $region129: #{_lambda_.1} parent=121 // pred_region
          %s2341 = smul.u32 2, %s28
          %s2342 = smul.addr %s2341, 8
          %s2343 = scalar_lea.vmem %s17, %s2342
          // Predicated region
          $region131: #{_lambda_.1} parent=129 // pred_check
            _
          $region132: #{_lambda_.1} parent=129 // pred_check_branch
            %2345 = sbr.rel (0) target = $region134
          $region133: #{_lambda_.1} parent=129 // pred_region
            // Predicated region
            $region135: #{_lambda_.1} parent=133 // pred_check
              _
            $region136: #{_lambda_.1} parent=133 // pred_check_branch
              %2347 = sbr.rel (0) target = $region138
            $region137: #{_lambda_.1} parent=133 // pred_region
              loop: start=0, step=1, limit=1
              $region139: #{_lambda_.1} parent=137 // loop_pre_header
                _
              $region140: #{_lambda_.1} parent=137 // loop_header
                %s2349 = sphi 0, %s2353
                %p2350 = scmp.ge.s32.totalorder %s2349, 1
                %s2354 = sphi %s2337, %s2337
                %s2355 = sphi %s2343, %s2343
              $region141: #{_lambda_.1} parent=137 // loop_header_branch
                %2352 = sbr.rel (%p2350) target = $region145
              $region142: #{_lambda_.1} parent=137 // loop_body
                %v2356 = vld [vmem:[%s2354] sm:$0xff]
                %2357 = vst [vmem:[%s2355] sm:$0xff] %v2356
                %v2358 = vld [vmem:[%s2354 + $0x8] sm:$0xff]
                %2359 = vst [vmem:[%s2355 + $0x8] sm:$0xff] %v2358
                %v2360 = vld [vmem:[%s2354 + $0x10] sm:$0xff]
                %2361 = vst [vmem:[%s2355 + $0x20] sm:$0xff] %v2360
                %v2362 = vld [vmem:[%s2354 + $0x18] sm:$0xff]
                %2363 = vst [vmem:[%s2355 + $0x28] sm:$0xff] %v2362
              $region143: #{_lambda_.1} parent=137 // loop_footer
                %s2353 = sadd.s32 1, %s2349
              $region144: #{_lambda_.1} parent=137 // loop_footer_branch
                %2348 = sbr.rel target = $region140
              $region145: #{_lambda_.1} parent=137 // loop_exit
                _
            $region138: #{_lambda_.1} parent=133 // pred_fallthru
              _
            // Predicated region
            $region146: #{_lambda_.1} parent=133 // pred_check
              _
            $region147: #{_lambda_.1} parent=133 // pred_check_branch
              %2365 = sbr.rel target = $region149
            $region148: #{_lambda_.1} parent=133 // pred_region
              _
            $region149: #{_lambda_.1} parent=133 // pred_fallthru
              _
          $region134: #{_lambda_.1} parent=129 // pred_fallthru
            _
          %2366 = vnop
        $region130: #{_lambda_.1} parent=121 // pred_fallthru
          _
      $region122: #{_lambda_.1} parent=5 // pred_fallthru
        _
      %p2367 = scmp.le.s32.totalorder 2, %s23
      // Predicated region
      $region150: #{_lambda_.1} parent=5 // pred_check
        %p2368 = pneg %p2367
      $region151: #{_lambda_.1} parent=5 // pred_check_branch
        %2370 = sbr.rel (%p2368) target = $region153
      $region152: #{_lambda_.1} parent=5 // pred_region
        %s2371 = ssub.s32 %s23, 2
        // Predicated region
        $region154: #{_lambda_.1} parent=152 // pred_check
          %p2372 = pneg %p414
        $region155: #{_lambda_.1} parent=152 // pred_check_branch
          %2374 = sbr.rel (%p2372) target = $region157
        $region156: #{_lambda_.1} parent=152 // pred_region
          %s2375 = sand.u32 %s399, 1
          %s2376 = sand.u32 %s399, 1
          %s2377 = smul.addr %s2376, 32
          %s2378 = scalar_lea.vmem [#allocation3], %s2377
        $region157: #{_lambda_.1} parent=152 // pred_fallthru
          _
      $region153: #{_lambda_.1} parent=5 // pred_fallthru
        _
    $region6: #{_lambda_.1} parent=1 // loop_footer
      %s27 = sadd.s32 1, %s23
    $region7: #{_lambda_.1} parent=1 // loop_footer_branch
      %22 = sbr.rel target = $region3
    $region8: #{_lambda_.1} parent=1 // loop_exit
      _

</llo_original>
